<compile_context>
chip_gen: v5e
topology: v5e:2x2
jax: 0.10.0
libtpu: 0.0.40
codegen_flags: <defaults>
</compile_context>

<pallas_src>
import math

import jax
import jax.numpy as jnp
import numpy as np
from jax.experimental import pallas as pl
from jax.experimental.pallas import tpu as pltpu

# ----------------------------- model hyper-params -----------------------------
HIDDEN = 32          # hidden_size
HEAD_SIZE = 8        # attention_head_size
NUM_HEADS = 4        # num_attention_heads
ALL_HEAD = NUM_HEADS * HEAD_SIZE
LN_EPS = 1e-5        # torch nn.LayerNorm default


def _layer_norm(x, gamma, beta):
    mu = jnp.mean(x, axis=-1, keepdims=True)
    var = jnp.mean((x - mu) ** 2, axis=-1, keepdims=True)
    return (x - mu) * jax.lax.rsqrt(var + LN_EPS) * gamma + beta


# ----------------------------- the Pallas kernel -----------------------------
def cross_attention_kernel(xq_ref, xv_ref, wqkv_ref, bqkv_ref, wd_ref, bd_ref, ln_ref,
                           out_ref, scores_ref):
    bb, lq, hid = xq_ref.shape
    lk = xv_ref.shape[1]
    mq = bb * lq          # query rows
    mk = bb * lk          # key/value rows

    # Fuse batch and sequence into the matmul M dimension (position-wise ops).
    xq = xq_ref[...].reshape(mq, hid)          # (Bb*Lq, H)
    xv = xv_ref[...].reshape(mk, hid)          # (Bb*Lk, H)

    # Single fused Q|K|V projection.  1/sqrt(dh) is pre-folded into the q columns of
    # the packed weight/bias, so q comes out pre-scaled and the stored scores are the
    # scaled scores the module returns.
    # TODO(synk): at production M/N split back into a q matmul and a fused k|v matmul
    #             to avoid the wasted cross terms once each fills full MXU tiles.
    x_all = jnp.concatenate([xq, xv], axis=0)                         # (mq+mk, H)
    proj = (jnp.dot(x_all, wqkv_ref[...], preferred_element_type=jnp.float32)
            + bqkv_ref[...])                                          # (mq+mk, 3*AH)

    q3 = proj[:mq, 0:ALL_HEAD].reshape(bb, lq, ALL_HEAD)              # pre-scaled q
    k3 = proj[mq:, ALL_HEAD:2 * ALL_HEAD].reshape(bb, lk, ALL_HEAD)
    v3 = proj[mq:, 2 * ALL_HEAD:3 * ALL_HEAD].reshape(bb, lk, ALL_HEAD)

    # Per-head attention: rank-3 einsums batched over Bb, contracting on the trailing
    # dh axis -> no XLU transposes.  Scores go straight into the output ref (no
    # concatenated intermediate); per-head contexts are lane-concatenated so the
    # output projection is ONE K=AH matmul.
    # TODO(synk): batch the head dim into a single contraction (einsum over (Bb, NH))
    #             when the head-major relayout of q/k/v is worth it at production sizes.
    ctx_parts = []
    for h in range(NUM_HEADS):
        sl = slice(h * HEAD_SIZE, (h + 1) * HEAD_SIZE)
        q_h = q3[:, :, sl]                           # (Bb, Lq, dh)
        k_h = k3[:, :, sl]                           # (Bb, Lk, dh)
        v_h = v3[:, :, sl]                           # (Bb, Lk, dh)

        s_h = jnp.einsum('bqd,bkd->bqk', q_h, k_h,
                         preferred_element_type=jnp.float32)          # scaled scores
        scores_ref[:, h, :, :] = s_h                 # direct per-head store

        # softmax over keys; reciprocal runs on the EUP instead of a VPU divide.
        m = jnp.max(s_h, axis=-1, keepdims=True)
        e = jnp.exp(s_h - m)
        p = e * pl.reciprocal(jnp.sum(e, axis=-1, keepdims=True))

        ctx_h = jnp.einsum('bqk,bkd->bqd', p, v_h,
                           preferred_element_type=jnp.float32)        # (Bb, Lq, dh)
        ctx_parts.append(ctx_h.reshape(mq, HEAD_SIZE))

    ctx = jnp.concatenate(ctx_parts, axis=-1)                         # (Bb*Lq, AH)

    # Dense projection (single K=AH matmul) + bias + residual + LayerNorm.
    attn = jnp.dot(ctx, wd_ref[...], preferred_element_type=jnp.float32) + bd_ref[...]
    ln = ln_ref[...]
    out = _layer_norm(attn + xq, ln[0:1, :], ln[1:2, :])
    out_ref[...] = out.reshape(bb, lq, hid)


# ----------------------------- wrapper -----------------------------
def _tensorcores_per_chip():
    # v7x has 2 TensorCores/chip; v5e & v6e have 1 (grid is a sequential loop there,
    # so a batch split only adds per-step overhead and halves MXU M).
    try:
        kind = jax.devices()[0].device_kind.lower()
    except Exception:
        return 1
    return 2 if "v7" in kind else 1


def pack_params(params):
    """Pack module weights ONCE, outside the call path.

    * wq|wk|wv -> (H, 3*AH), bq|bk|bv -> (1, 3*AH); 1/sqrt(dh) folded into the q
      columns so the kernel never multiplies by the attention scale.
    * LayerNorm gamma/beta stacked into one (2, H) operand; biases made 2-D.
    """
    scale = 1.0 / math.sqrt(HEAD_SIZE)
    wqkv = jnp.concatenate([params["wq"] * scale, params["wk"], params["wv"]], axis=1)
    bqkv = jnp.concatenate([params["bq"] * scale, params["bk"], params["bv"]]
                           ).reshape(1, 3 * ALL_HEAD)
    wd = params["wd"]                                               # (AH, H)
    bd = params["bd"].reshape(1, HIDDEN)
    ln = jnp.stack([params["ln_g"], params["ln_b"]])                # (2, H)
    return (wqkv, bqkv, wd, bd, ln)


def cross_attention(xq, xv, packed, *, batch_block=None):
    B, Lq, H = xq.shape
    Lk = xv.shape[1]

    if batch_block is None:
        ncores = _tensorcores_per_chip()
        batch_block = B // ncores if (ncores > 1 and B % ncores == 0) else B
    assert B % batch_block == 0
    grid = (B // batch_block,)

    def full_spec(a):
        zero = (0,) * a.ndim
        return pl.BlockSpec(a.shape, lambda i, _z=zero: _z)

    in_specs = [
        pl.BlockSpec((batch_block, Lq, H), lambda i: (i, 0, 0)),
        pl.BlockSpec((batch_block, Lk, H), lambda i: (i, 0, 0)),
    ] + [full_spec(w) for w in packed]

    # TODO(synk): at production Lq/Lk, tile the scores output over Lq (parallel) /
    # Lk (arbitrary) grid axes, emit it lane-dense (Lk a multiple of 128, or bf16 on
    # HBM-bound v5e) and set an explicit vmem_limit_bytes so the f32 block fits
    # v7x's 64 MiB VMEM.
    out_specs = [
        pl.BlockSpec((batch_block, Lq, H), lambda i: (i, 0, 0)),
        pl.BlockSpec((batch_block, NUM_HEADS, Lq, Lk), lambda i: (i, 0, 0, 0)),
    ]
    out_shape = (
        jax.ShapeDtypeStruct((B, Lq, H), jnp.float32),
        jax.ShapeDtypeStruct((B, NUM_HEADS, Lq, Lk), jnp.float32),
    )

    return pl.pallas_call(
        cross_attention_kernel,
        grid=grid,
        in_specs=in_specs,
        out_specs=out_specs,
        out_shape=out_shape,
        compiler_params=pltpu.CompilerParams(dimension_semantics=("parallel",)),
    )(xq, xv, *packed)


# ----------------------------- pure-JAX reference -----------------------------
def reference(xq, xv, p):
    q = xq @ p["wq"] + p["bq"]
    k = xv @ p["wk"] + p["bk"]
    v = xv @ p["wv"] + p["bv"]

    def split_heads(x):   # (B, L, AH) -> (B, NH, L, dh)
        B, L, _ = x.shape
        return x.reshape(B, L, NUM_HEADS, HEAD_SIZE).transpose(0, 2, 1, 3)

    qh, kh, vh = split_heads(q), split_heads(k), split_heads(v)
    scores = jnp.einsum("bhld,bhrd->bhlr", qh, kh) / math.sqrt(HEAD_SIZE)
    probs = jax.nn.softmax(scores, axis=-1)
    ctx = jnp.einsum("bhlr,bhrd->bhld", probs, vh)
    B, _, Lq, _ = ctx.shape
    ctx = ctx.transpose(0, 2, 1, 3).reshape(B, Lq, ALL_HEAD)
    out = ctx @ p["wd"] + p["bd"]
    out = _layer_norm(out + xq, p["ln_g"], p["ln_b"])
    return out, scores


# ----------------------------- main -----------------------------
def make_params(key):
    ks = jax.random.split(key, 10)
    s = 0.1
    return {
        "wq": s * jax.random.normal(ks[0], (HIDDEN, ALL_HEAD), jnp.float32),
        "bq": s * jax.random.normal(ks[1], (ALL_HEAD,), jnp.float32),
        "wk": s * jax.random.normal(ks[2], (HIDDEN, ALL_HEAD), jnp.float32),
        "bk": s * jax.random.normal(ks[3], (ALL_HEAD,), jnp.float32),
        "wv": s * jax.random.normal(ks[4], (HIDDEN, ALL_HEAD), jnp.float32),
        "bv": s * jax.random.normal(ks[5], (ALL_HEAD,), jnp.float32),
        "wd": s * jax.random.normal(ks[6], (ALL_HEAD, HIDDEN), jnp.float32),
        "bd": s * jax.random.normal(ks[7], (HIDDEN,), jnp.float32),
        "ln_g": 1.0 + 0.1 * jax.random.normal(ks[8], (HIDDEN,), jnp.float32),
        "ln_b": 0.1 * jax.random.normal(ks[9], (HIDDEN,), jnp.float32),
    }


if __name__ == "__main__":
    B, LQ, LK = 4, 8, 8
    key = jax.random.PRNGKey(0)
    kq, kv_, kp = jax.random.split(key, 3)

    xq = jax.random.normal(kq, (B, LQ, HIDDEN), jnp.float32)
    xv = jax.random.normal(kv_, (B, LK, HIDDEN), jnp.float32)
    params = make_params(kp)

    packed = pack_params(params)          # hoisted: packing runs once, not per call
    packed = jax.block_until_ready(packed)

    out, scores = cross_attention(xq, xv, packed)
    out = jax.block_until_ready(out)
    scores = jax.block_until_ready(scores)

    ref_out, ref_scores = reference(xq, xv, params)
    np.testing.assert_allclose(np.asarray(out), np.asarray(ref_out), atol=1e-5, rtol=1e-5)
    np.testing.assert_allclose(np.asarray(scores), np.asarray(ref_scores), atol=1e-5, rtol=1e-5)

    print("KERNEL_OK")
</pallas_src>

<mosaic_0001>
module attributes {stable_mosaic.version = 11 : i64} {
  func.func @cross_attention_kernel(%arg0: i32, %arg1: memref<4x8x32xf32, #tpu.memory_space<vmem>>, %arg2: memref<4x8x32xf32, #tpu.memory_space<vmem>>, %arg3: memref<32x96xf32, #tpu.memory_space<vmem>>, %arg4: memref<1x96xf32, #tpu.memory_space<vmem>>, %arg5: memref<32x32xf32, #tpu.memory_space<vmem>>, %arg6: memref<1x32xf32, #tpu.memory_space<vmem>>, %arg7: memref<2x32xf32, #tpu.memory_space<vmem>>, %arg8: memref<4x8x32xf32, #tpu.memory_space<vmem>>, %arg9: memref<4x4x8x8xf32, #tpu.memory_space<vmem>>) attributes {dimension_semantics = [#tpu.dimension_semantics<parallel>], iteration_bounds = array<i64: 1>, scalar_prefetch = 0 : i64, scratch_operands = 0 : i64, tpu.core_type = #tpu.core_type<tc>, window_params = [{transform_indices = @transform_0, window_bounds = array<i64: 4, 8, 32>}, {transform_indices = @transform_1, window_bounds = array<i64: 4, 8, 32>}, {pipeline_mode = #tpu.pipeline_mode<synchronous>, transform_indices = @transform_2, window_bounds = array<i64: 32, 96>}, {pipeline_mode = #tpu.pipeline_mode<synchronous>, transform_indices = @transform_3, window_bounds = array<i64: 1, 96>}, {pipeline_mode = #tpu.pipeline_mode<synchronous>, transform_indices = @transform_4, window_bounds = array<i64: 32, 32>}, {pipeline_mode = #tpu.pipeline_mode<synchronous>, transform_indices = @transform_5, window_bounds = array<i64: 1, 32>}, {pipeline_mode = #tpu.pipeline_mode<synchronous>, transform_indices = @transform_6, window_bounds = array<i64: 2, 32>}, {transform_indices = @transform_7, window_bounds = array<i64: 4, 8, 32>}, {transform_indices = @transform_8, window_bounds = array<i64: 4, 4, 8, 8>}]} {
    %c0 = arith.constant 0 : index
    %c0_0 = arith.constant 0 : index
    %c0_1 = arith.constant 0 : index
    %0 = vector.load %arg1[%c0, %c0_0, %c0_1] : memref<4x8x32xf32, #tpu.memory_space<vmem>>, vector<4x8x32xf32>
    %1 = vector.shape_cast %0 : vector<4x8x32xf32> to vector<32x32xf32>
    %c0_2 = arith.constant 0 : index
    %c0_3 = arith.constant 0 : index
    %c0_4 = arith.constant 0 : index
    %2 = vector.load %arg2[%c0_2, %c0_3, %c0_4] : memref<4x8x32xf32, #tpu.memory_space<vmem>>, vector<4x8x32xf32>
    %3 = vector.shape_cast %2 : vector<4x8x32xf32> to vector<32x32xf32>
    %4 = tpu.concatenate %1, %3 in 0 : vector<32x32xf32>, vector<32x32xf32> -> vector<64x32xf32>
    %c0_5 = arith.constant 0 : index
    %c0_6 = arith.constant 0 : index
    %5 = vector.load %arg3[%c0_5, %c0_6] : memref<32x96xf32, #tpu.memory_space<vmem>>, vector<32x96xf32>
    %cst = arith.constant dense<0.000000e+00> : vector<64x96xf32>
    %6 = tpu.matmul %4, %5, %cst {dimension_numbers = #tpu.dot_dimension_numbers<[1], [0], [0], [1], [0, 0, 1, 1], [], []>} : vector<64x32xf32>, vector<32x96xf32>, vector<64x96xf32> -> vector<64x96xf32>
    %c0_7 = arith.constant 0 : index
    %c0_8 = arith.constant 0 : index
    %7 = vector.load %arg4[%c0_7, %c0_8] : memref<1x96xf32, #tpu.memory_space<vmem>>, vector<1x96xf32>
    %8 = vector.broadcast %7 : vector<1x96xf32> to vector<64x96xf32>
    %9 = arith.addf %6, %8 : vector<64x96xf32>
    %10 = vector.extract_strided_slice %9 {offsets = [0, 0], sizes = [32, 32], strides = [1, 1]} : vector<64x96xf32> to vector<32x32xf32>
    %11 = vector.shape_cast %10 : vector<32x32xf32> to vector<4x8x32xf32>
    %12 = vector.extract_strided_slice %9 {offsets = [32, 32], sizes = [32, 32], strides = [1, 1]} : vector<64x96xf32> to vector<32x32xf32>
    %13 = vector.shape_cast %12 : vector<32x32xf32> to vector<4x8x32xf32>
    %14 = vector.extract_strided_slice %9 {offsets = [32, 64], sizes = [32, 32], strides = [1, 1]} : vector<64x96xf32> to vector<32x32xf32>
    %15 = vector.shape_cast %14 : vector<32x32xf32> to vector<4x8x32xf32>
    %16 = vector.extract_strided_slice %11 {offsets = [0, 0, 0], sizes = [4, 8, 8], strides = [1, 1, 1]} : vector<4x8x32xf32> to vector<4x8x8xf32>
    %17 = vector.extract_strided_slice %13 {offsets = [0, 0, 0], sizes = [4, 8, 8], strides = [1, 1, 1]} : vector<4x8x32xf32> to vector<4x8x8xf32>
    %18 = vector.extract_strided_slice %15 {offsets = [0, 0, 0], sizes = [4, 8, 8], strides = [1, 1, 1]} : vector<4x8x32xf32> to vector<4x8x8xf32>
    "tpu.trace_start"() <{level = 10 : i32, message = "bqd,bkd->bqk"}> : () -> ()
    %cst_9 = arith.constant dense<0.000000e+00> : vector<4x8x8xf32>
    %19 = tpu.matmul %16, %17, %cst_9 {dimension_numbers = #tpu.dot_dimension_numbers<[2], [2], [1], [1], [0, 0, 0, 1, 1, 1], [0], [0]>} : vector<4x8x8xf32>, vector<4x8x8xf32>, vector<4x8x8xf32> -> vector<4x8x8xf32>
    "tpu.trace_stop"() : () -> ()
    %c0_10 = arith.constant 0 : index
    %c0_11 = arith.constant 0 : index
    %c0_12 = arith.constant 0 : index
    %c0_13 = arith.constant 0 : index
    %20 = vector.load %arg9[%c0_10, %c0_11, %c0_12, %c0_13] : memref<4x4x8x8xf32, #tpu.memory_space<vmem>>, vector<4x1x8x8xf32>
    %21 = vector.shape_cast %20 : vector<4x1x8x8xf32> to vector<4x8x8xf32>
    %22 = vector.shape_cast %19 : vector<4x8x8xf32> to vector<4x1x8x8xf32>
    tpu.vector_store %arg9[%c0_10, %c0_11, %c0_12, %c0_13], %22 {strides = array<i32>} : memref<4x4x8x8xf32, #tpu.memory_space<vmem>>, vector<4x1x8x8xf32>,
    %cst_14 = arith.constant dense<0xFF800000> : vector<4x8xf32>
    %23 = vector.multi_reduction <maximumf>, %19, %cst_14 [2] : vector<4x8x8xf32> to vector<4x8xf32>
    %24 = vector.shape_cast %23 : vector<4x8xf32> to vector<4x8x1xf32>
    %25 = vector.broadcast %24 : vector<4x8x1xf32> to vector<4x8x8xf32>
    %26 = arith.subf %19, %25 : vector<4x8x8xf32>
    %27 = math.exp %26 : vector<4x8x8xf32>
    %cst_15 = arith.constant dense<0.000000e+00> : vector<4x8xf32>
    %28 = vector.multi_reduction <add>, %27, %cst_15 [2] : vector<4x8x8xf32> to vector<4x8xf32>
    %29 = vector.shape_cast %28 : vector<4x8xf32> to vector<4x8x1xf32>
    %30 = tpu.reciprocal %29 : vector<4x8x1xf32> -> vector<4x8x1xf32>
    %31 = vector.broadcast %30 : vector<4x8x1xf32> to vector<4x8x8xf32>
    %32 = arith.mulf %27, %31 : vector<4x8x8xf32>
    "tpu.trace_start"() <{level = 10 : i32, message = "bqk,bkd->bqd"}> : () -> ()
    %cst_16 = arith.constant dense<0.000000e+00> : vector<4x8x8xf32>
    %33 = tpu.matmul %32, %18, %cst_16 {dimension_numbers = #tpu.dot_dimension_numbers<[2], [1], [1], [2], [0, 0, 0, 1, 1, 2], [0], [0]>} : vector<4x8x8xf32>, vector<4x8x8xf32>, vector<4x8x8xf32> -> vector<4x8x8xf32>
    "tpu.trace_stop"() : () -> ()
    %34 = vector.shape_cast %33 : vector<4x8x8xf32> to vector<32x8xf32>
    %35 = vector.extract_strided_slice %11 {offsets = [0, 0, 8], sizes = [4, 8, 8], strides = [1, 1, 1]} : vector<4x8x32xf32> to vector<4x8x8xf32>
    %36 = vector.extract_strided_slice %13 {offsets = [0, 0, 8], sizes = [4, 8, 8], strides = [1, 1, 1]} : vector<4x8x32xf32> to vector<4x8x8xf32>
    %37 = vector.extract_strided_slice %15 {offsets = [0, 0, 8], sizes = [4, 8, 8], strides = [1, 1, 1]} : vector<4x8x32xf32> to vector<4x8x8xf32>
    "tpu.trace_start"() <{level = 10 : i32, message = "bqd,bkd->bqk"}> : () -> ()
    %cst_17 = arith.constant dense<0.000000e+00> : vector<4x8x8xf32>
    %38 = tpu.matmul %35, %36, %cst_17 {dimension_numbers = #tpu.dot_dimension_numbers<[2], [2], [1], [1], [0, 0, 0, 1, 1, 1], [0], [0]>} : vector<4x8x8xf32>, vector<4x8x8xf32>, vector<4x8x8xf32> -> vector<4x8x8xf32>
    "tpu.trace_stop"() : () -> ()
    %c0_18 = arith.constant 0 : index
    %c1 = arith.constant 1 : index
    %c0_19 = arith.constant 0 : index
    %c0_20 = arith.constant 0 : index
    %39 = vector.load %arg9[%c0_18, %c1, %c0_19, %c0_20] : memref<4x4x8x8xf32, #tpu.memory_space<vmem>>, vector<4x1x8x8xf32>
    %40 = vector.shape_cast %39 : vector<4x1x8x8xf32> to vector<4x8x8xf32>
    %41 = vector.shape_cast %38 : vector<4x8x8xf32> to vector<4x1x8x8xf32>
    tpu.vector_store %arg9[%c0_18, %c1, %c0_19, %c0_20], %41 {strides = array<i32>} : memref<4x4x8x8xf32, #tpu.memory_space<vmem>>, vector<4x1x8x8xf32>,
    %cst_21 = arith.constant dense<0xFF800000> : vector<4x8xf32>
    %42 = vector.multi_reduction <maximumf>, %38, %cst_21 [2] : vector<4x8x8xf32> to vector<4x8xf32>
    %43 = vector.shape_cast %42 : vector<4x8xf32> to vector<4x8x1xf32>
    %44 = vector.broadcast %43 : vector<4x8x1xf32> to vector<4x8x8xf32>
    %45 = arith.subf %38, %44 : vector<4x8x8xf32>
    %46 = math.exp %45 : vector<4x8x8xf32>
    %cst_22 = arith.constant dense<0.000000e+00> : vector<4x8xf32>
    %47 = vector.multi_reduction <add>, %46, %cst_22 [2] : vector<4x8x8xf32> to vector<4x8xf32>
    %48 = vector.shape_cast %47 : vector<4x8xf32> to vector<4x8x1xf32>
    %49 = tpu.reciprocal %48 : vector<4x8x1xf32> -> vector<4x8x1xf32>
    %50 = vector.broadcast %49 : vector<4x8x1xf32> to vector<4x8x8xf32>
    %51 = arith.mulf %46, %50 : vector<4x8x8xf32>
    "tpu.trace_start"() <{level = 10 : i32, message = "bqk,bkd->bqd"}> : () -> ()
    %cst_23 = arith.constant dense<0.000000e+00> : vector<4x8x8xf32>
    %52 = tpu.matmul %51, %37, %cst_23 {dimension_numbers = #tpu.dot_dimension_numbers<[2], [1], [1], [2], [0, 0, 0, 1, 1, 2], [0], [0]>} : vector<4x8x8xf32>, vector<4x8x8xf32>, vector<4x8x8xf32> -> vector<4x8x8xf32>
    "tpu.trace_stop"() : () -> ()
    %53 = vector.shape_cast %52 : vector<4x8x8xf32> to vector<32x8xf32>
    %54 = vector.extract_strided_slice %11 {offsets = [0, 0, 16], sizes = [4, 8, 8], strides = [1, 1, 1]} : vector<4x8x32xf32> to vector<4x8x8xf32>
    %55 = vector.extract_strided_slice %13 {offsets = [0, 0, 16], sizes = [4, 8, 8], strides = [1, 1, 1]} : vector<4x8x32xf32> to vector<4x8x8xf32>
    %56 = vector.extract_strided_slice %15 {offsets = [0, 0, 16], sizes = [4, 8, 8], strides = [1, 1, 1]} : vector<4x8x32xf32> to vector<4x8x8xf32>
    "tpu.trace_start"() <{level = 10 : i32, message = "bqd,bkd->bqk"}> : () -> ()
    %cst_24 = arith.constant dense<0.000000e+00> : vector<4x8x8xf32>
    %57 = tpu.matmul %54, %55, %cst_24 {dimension_numbers = #tpu.dot_dimension_numbers<[2], [2], [1], [1], [0, 0, 0, 1, 1, 1], [0], [0]>} : vector<4x8x8xf32>, vector<4x8x8xf32>, vector<4x8x8xf32> -> vector<4x8x8xf32>
    "tpu.trace_stop"() : () -> ()
    %c0_25 = arith.constant 0 : index
    %c2 = arith.constant 2 : index
    %c0_26 = arith.constant 0 : index
    %c0_27 = arith.constant 0 : index
    %58 = vector.load %arg9[%c0_25, %c2, %c0_26, %c0_27] : memref<4x4x8x8xf32, #tpu.memory_space<vmem>>, vector<4x1x8x8xf32>
    %59 = vector.shape_cast %58 : vector<4x1x8x8xf32> to vector<4x8x8xf32>
    %60 = vector.shape_cast %57 : vector<4x8x8xf32> to vector<4x1x8x8xf32>
    tpu.vector_store %arg9[%c0_25, %c2, %c0_26, %c0_27], %60 {strides = array<i32>} : memref<4x4x8x8xf32, #tpu.memory_space<vmem>>, vector<4x1x8x8xf32>,
    %cst_28 = arith.constant dense<0xFF800000> : vector<4x8xf32>
    %61 = vector.multi_reduction <maximumf>, %57, %cst_28 [2] : vector<4x8x8xf32> to vector<4x8xf32>
    %62 = vector.shape_cast %61 : vector<4x8xf32> to vector<4x8x1xf32>
    %63 = vector.broadcast %62 : vector<4x8x1xf32> to vector<4x8x8xf32>
    %64 = arith.subf %57, %63 : vector<4x8x8xf32>
    %65 = math.exp %64 : vector<4x8x8xf32>
    %cst_29 = arith.constant dense<0.000000e+00> : vector<4x8xf32>
    %66 = vector.multi_reduction <add>, %65, %cst_29 [2] : vector<4x8x8xf32> to vector<4x8xf32>
    %67 = vector.shape_cast %66 : vector<4x8xf32> to vector<4x8x1xf32>
    %68 = tpu.reciprocal %67 : vector<4x8x1xf32> -> vector<4x8x1xf32>
    %69 = vector.broadcast %68 : vector<4x8x1xf32> to vector<4x8x8xf32>
    %70 = arith.mulf %65, %69 : vector<4x8x8xf32>
    "tpu.trace_start"() <{level = 10 : i32, message = "bqk,bkd->bqd"}> : () -> ()
    %cst_30 = arith.constant dense<0.000000e+00> : vector<4x8x8xf32>
    %71 = tpu.matmul %70, %56, %cst_30 {dimension_numbers = #tpu.dot_dimension_numbers<[2], [1], [1], [2], [0, 0, 0, 1, 1, 2], [0], [0]>} : vector<4x8x8xf32>, vector<4x8x8xf32>, vector<4x8x8xf32> -> vector<4x8x8xf32>
    "tpu.trace_stop"() : () -> ()
    %72 = vector.shape_cast %71 : vector<4x8x8xf32> to vector<32x8xf32>
    %73 = vector.extract_strided_slice %11 {offsets = [0, 0, 24], sizes = [4, 8, 8], strides = [1, 1, 1]} : vector<4x8x32xf32> to vector<4x8x8xf32>
    %74 = vector.extract_strided_slice %13 {offsets = [0, 0, 24], sizes = [4, 8, 8], strides = [1, 1, 1]} : vector<4x8x32xf32> to vector<4x8x8xf32>
    %75 = vector.extract_strided_slice %15 {offsets = [0, 0, 24], sizes = [4, 8, 8], strides = [1, 1, 1]} : vector<4x8x32xf32> to vector<4x8x8xf32>
    "tpu.trace_start"() <{level = 10 : i32, message = "bqd,bkd->bqk"}> : () -> ()
    %cst_31 = arith.constant dense<0.000000e+00> : vector<4x8x8xf32>
    %76 = tpu.matmul %73, %74, %cst_31 {dimension_numbers = #tpu.dot_dimension_numbers<[2], [2], [1], [1], [0, 0, 0, 1, 1, 1], [0], [0]>} : vector<4x8x8xf32>, vector<4x8x8xf32>, vector<4x8x8xf32> -> vector<4x8x8xf32>
    "tpu.trace_stop"() : () -> ()
    %c0_32 = arith.constant 0 : index
    %c3 = arith.constant 3 : index
    %c0_33 = arith.constant 0 : index
    %c0_34 = arith.constant 0 : index
    %77 = vector.load %arg9[%c0_32, %c3, %c0_33, %c0_34] : memref<4x4x8x8xf32, #tpu.memory_space<vmem>>, vector<4x1x8x8xf32>
    %78 = vector.shape_cast %77 : vector<4x1x8x8xf32> to vector<4x8x8xf32>
    %79 = vector.shape_cast %76 : vector<4x8x8xf32> to vector<4x1x8x8xf32>
    tpu.vector_store %arg9[%c0_32, %c3, %c0_33, %c0_34], %79 {strides = array<i32>} : memref<4x4x8x8xf32, #tpu.memory_space<vmem>>, vector<4x1x8x8xf32>,
    %cst_35 = arith.constant dense<0xFF800000> : vector<4x8xf32>
    %80 = vector.multi_reduction <maximumf>, %76, %cst_35 [2] : vector<4x8x8xf32> to vector<4x8xf32>
    %81 = vector.shape_cast %80 : vector<4x8xf32> to vector<4x8x1xf32>
    %82 = vector.broadcast %81 : vector<4x8x1xf32> to vector<4x8x8xf32>
    %83 = arith.subf %76, %82 : vector<4x8x8xf32>
    %84 = math.exp %83 : vector<4x8x8xf32>
    %cst_36 = arith.constant dense<0.000000e+00> : vector<4x8xf32>
    %85 = vector.multi_reduction <add>, %84, %cst_36 [2] : vector<4x8x8xf32> to vector<4x8xf32>
    %86 = vector.shape_cast %85 : vector<4x8xf32> to vector<4x8x1xf32>
    %87 = tpu.reciprocal %86 : vector<4x8x1xf32> -> vector<4x8x1xf32>
    %88 = vector.broadcast %87 : vector<4x8x1xf32> to vector<4x8x8xf32>
    %89 = arith.mulf %84, %88 : vector<4x8x8xf32>
    "tpu.trace_start"() <{level = 10 : i32, message = "bqk,bkd->bqd"}> : () -> ()
    %cst_37 = arith.constant dense<0.000000e+00> : vector<4x8x8xf32>
    %90 = tpu.matmul %89, %75, %cst_37 {dimension_numbers = #tpu.dot_dimension_numbers<[2], [1], [1], [2], [0, 0, 0, 1, 1, 2], [0], [0]>} : vector<4x8x8xf32>, vector<4x8x8xf32>, vector<4x8x8xf32> -> vector<4x8x8xf32>
    "tpu.trace_stop"() : () -> ()
    %91 = vector.shape_cast %90 : vector<4x8x8xf32> to vector<32x8xf32>
    %92 = tpu.concatenate %34, %53, %72, %91 in 1 : vector<32x8xf32>, vector<32x8xf32>, vector<32x8xf32>, vector<32x8xf32> -> vector<32x32xf32>
    %c0_38 = arith.constant 0 : index
    %c0_39 = arith.constant 0 : index
    %93 = vector.load %arg5[%c0_38, %c0_39] : memref<32x32xf32, #tpu.memory_space<vmem>>, vector<32x32xf32>
    %cst_40 = arith.constant dense<0.000000e+00> : vector<32x32xf32>
    %94 = tpu.matmul %92, %93, %cst_40 {dimension_numbers = #tpu.dot_dimension_numbers<[1], [0], [0], [1], [0, 0, 1, 1], [], []>} : vector<32x32xf32>, vector<32x32xf32>, vector<32x32xf32> -> vector<32x32xf32>
    %c0_41 = arith.constant 0 : index
    %c0_42 = arith.constant 0 : index
    %95 = vector.load %arg6[%c0_41, %c0_42] : memref<1x32xf32, #tpu.memory_space<vmem>>, vector<1x32xf32>
    %96 = vector.broadcast %95 : vector<1x32xf32> to vector<32x32xf32>
    %97 = arith.addf %94, %96 : vector<32x32xf32>
    %c0_43 = arith.constant 0 : index
    %c0_44 = arith.constant 0 : index
    %98 = vector.load %arg7[%c0_43, %c0_44] : memref<2x32xf32, #tpu.memory_space<vmem>>, vector<2x32xf32>
    %99 = arith.addf %97, %1 : vector<32x32xf32>
    %100 = vector.extract_strided_slice %98 {offsets = [0, 0], sizes = [1, 32], strides = [1, 1]} : vector<2x32xf32> to vector<1x32xf32>
    %101 = vector.extract_strided_slice %98 {offsets = [1, 0], sizes = [1, 32], strides = [1, 1]} : vector<2x32xf32> to vector<1x32xf32>
    %cst_45 = arith.constant dense<0.000000e+00> : vector<32xf32>
    %102 = vector.multi_reduction <add>, %99, %cst_45 [1] : vector<32x32xf32> to vector<32xf32>
    %103 = vector.shape_cast %102 : vector<32xf32> to vector<32x1xf32>
    %cst_46 = arith.constant 3.200000e+01 : f32
    %104 = vector.broadcast %cst_46 : f32 to vector<32x1xf32>
    %105 = arith.divf %103, %104 : vector<32x1xf32>
    %106 = vector.broadcast %105 : vector<32x1xf32> to vector<32x32xf32>
    %107 = arith.subf %99, %106 : vector<32x32xf32>
    %108 = arith.mulf %107, %107 : vector<32x32xf32>
    %cst_47 = arith.constant dense<0.000000e+00> : vector<32xf32>
    %109 = vector.multi_reduction <add>, %108, %cst_47 [1] : vector<32x32xf32> to vector<32xf32>
    %110 = vector.shape_cast %109 : vector<32xf32> to vector<32x1xf32>
    %cst_48 = arith.constant 3.200000e+01 : f32
    %111 = vector.broadcast %cst_48 : f32 to vector<32x1xf32>
    %112 = arith.divf %110, %111 : vector<32x1xf32>
    %113 = vector.broadcast %105 : vector<32x1xf32> to vector<32x32xf32>
    %114 = arith.subf %99, %113 : vector<32x32xf32>
    %cst_49 = arith.constant 9.99999974E-6 : f32
    %115 = vector.broadcast %cst_49 : f32 to vector<32x1xf32>
    %116 = arith.addf %112, %115 : vector<32x1xf32>
    %117 = math.rsqrt %116 : vector<32x1xf32>
    %118 = vector.broadcast %117 : vector<32x1xf32> to vector<32x32xf32>
    %119 = arith.mulf %114, %118 : vector<32x32xf32>
    %120 = vector.broadcast %100 : vector<1x32xf32> to vector<32x32xf32>
    %121 = arith.mulf %119, %120 : vector<32x32xf32>
    %122 = vector.broadcast %101 : vector<1x32xf32> to vector<32x32xf32>
    %123 = arith.addf %121, %122 : vector<32x32xf32>
    %124 = vector.shape_cast %123 : vector<32x32xf32> to vector<4x8x32xf32>
    %c0_50 = arith.constant 0 : index
    %c0_51 = arith.constant 0 : index
    %c0_52 = arith.constant 0 : index
    %125 = vector.load %arg8[%c0_50, %c0_51, %c0_52] : memref<4x8x32xf32, #tpu.memory_space<vmem>>, vector<4x8x32xf32>
    tpu.vector_store %arg8[%c0_50, %c0_51, %c0_52], %124 {strides = array<i32>} : memref<4x8x32xf32, #tpu.memory_space<vmem>>, vector<4x8x32xf32>,
    return
  }
  func.func @transform_0(%arg0: i32) -> (i32, i32, i32) {
    %c0_i32 = arith.constant 0 : i32
    %c0_i32_0 = arith.constant 0 : i32
    %c0_i32_1 = arith.constant 0 : i32
    return %arg0, %c0_i32, %c0_i32_0 : i32, i32, i32
  }
  func.func @transform_1(%arg0: i32) -> (i32, i32, i32) {
    %c0_i32 = arith.constant 0 : i32
    %c0_i32_0 = arith.constant 0 : i32
    %c0_i32_1 = arith.constant 0 : i32
    return %arg0, %c0_i32, %c0_i32_0 : i32, i32, i32
  }
  func.func @transform_2(%arg0: i32) -> (i32, i32) {
    %c0_i32 = arith.constant 0 : i32
    %c0_i32_0 = arith.constant 0 : i32
    %c0_i32_1 = arith.constant 0 : i32
    return %c0_i32, %c0_i32_0 : i32, i32
  }
  func.func @transform_3(%arg0: i32) -> (i32, i32) {
    %c0_i32 = arith.constant 0 : i32
    %c0_i32_0 = arith.constant 0 : i32
    %c0_i32_1 = arith.constant 0 : i32
    return %c0_i32, %c0_i32_0 : i32, i32
  }
  func.func @transform_4(%arg0: i32) -> (i32, i32) {
    %c0_i32 = arith.constant 0 : i32
    %c0_i32_0 = arith.constant 0 : i32
    %c0_i32_1 = arith.constant 0 : i32
    return %c0_i32, %c0_i32_0 : i32, i32
  }
  func.func @transform_5(%arg0: i32) -> (i32, i32) {
    %c0_i32 = arith.constant 0 : i32
    %c0_i32_0 = arith.constant 0 : i32
    %c0_i32_1 = arith.constant 0 : i32
    return %c0_i32, %c0_i32_0 : i32, i32
  }
  func.func @transform_6(%arg0: i32) -> (i32, i32) {
    %c0_i32 = arith.constant 0 : i32
    %c0_i32_0 = arith.constant 0 : i32
    %c0_i32_1 = arith.constant 0 : i32
    return %c0_i32, %c0_i32_0 : i32, i32
  }
  func.func @transform_7(%arg0: i32) -> (i32, i32, i32) {
    %c0_i32 = arith.constant 0 : i32
    %c0_i32_0 = arith.constant 0 : i32
    %c0_i32_1 = arith.constant 0 : i32
    return %arg0, %c0_i32, %c0_i32_0 : i32, i32, i32
  }
  func.func @transform_8(%arg0: i32) -> (i32, i32, i32, i32) {
    %c0_i32 = arith.constant 0 : i32
    %c0_i32_0 = arith.constant 0 : i32
    %c0_i32_1 = arith.constant 0 : i32
    %c0_i32_2 = arith.constant 0 : i32
    return %arg0, %c0_i32, %c0_i32_0, %c0_i32_1 : i32, i32, i32, i32
  }
}

</mosaic_0001>

<llo_original>
// kernel: tpu_custom_call.1
$region0: #{tpu_custom_call.1}
  #allocation0 [shape = 'u32[]', space=smem, size = 0x4, offset = 0x4, fixed_abs, tag = 'smem constant byte address 0x4 - core index']
  #allocation1 [shape = 'u32[72,128]{1,0:T(1,128)}', space=vmem, size = 0x9000, scoped, tag = 'internal scratch']
  %s0 = inlined_call_operand.hbm [shape: f32[4,8,32], index: 0, kind: input, shape index: {}]
  %s1 = inlined_call_operand.hbm [shape: f32[4,8,32], index: 1, kind: input, shape index: {}]
  %s2 = inlined_call_operand.hbm [shape: f32[32,96], index: 2, kind: input, shape index: {}]
  %s3 = inlined_call_operand.vmem [shape: f32[1,96], index: 3, kind: input, shape index: {}]
  %s4 = inlined_call_operand.hbm [shape: f32[32,32], index: 4, kind: input, shape index: {}]
  %s5 = inlined_call_operand.vmem [shape: f32[1,32], index: 5, kind: input, shape index: {}]
  %s6 = inlined_call_operand.vmem [shape: f32[2,32], index: 6, kind: input, shape index: {}]
  %s7 = inlined_call_operand.hbm [shape: f32[4,8,32], index: 7, kind: output, shape index: {0}]
  %s8 = inlined_call_operand.hbm [shape: f32[4,4,8,8], index: 8, kind: output, shape index: {1}]
  %9 = xla_tuple %s7, %s8
  %s10 = sld [smem:[#allocation0]]
  $region62: #{tpu_custom_call.1} parent=0
    _
  %s12 = ssub.s32 1, %s10
  %s13 = scalar_select 0, %s12, %s10
  $region1: #{tpu_custom_call.1} parent=0
    #allocation2 [shape = 'u8[16384]{0}', space=vmem, size = 0x4000, scoped, tag = 'input window, operand 0, single buffered']
    #allocation3 [shape = 's32[1]{0}', space=sflag, size = 0x4, scoped, tag = 'scoped memory for tpu_custom_call.1']
    #allocation4 [shape = 's32[1]{0}', space=sflag, size = 0x4, scoped, tag = 'scoped memory for tpu_custom_call.1']
    #allocation5 [shape = 'u8[16384]{0}', space=vmem, size = 0x4000, scoped, tag = 'input window, operand 1, single buffered']
    #allocation6 [shape = 's32[1]{0}', space=sflag, size = 0x4, scoped, tag = 'scoped memory for tpu_custom_call.1']
    #allocation7 [shape = 'u8[16384]{0}', space=vmem, size = 0x4000, scoped, tag = 'input window, operand 2, single buffered']
    #allocation8 [shape = 'u8[16384]{0}', space=vmem, size = 0x4000, scoped, tag = 'input window, operand 4, single buffered']
    #allocation9 [shape = 's32[1]{0}', space=sflag, size = 0x4, scoped, tag = 'scoped memory for tpu_custom_call.1']
    #allocation10 [shape = 'u8[16384]{0}', space=vmem, size = 0x4000, scoped, tag = 'output window, operand 0, single buffered']
    #allocation11 [shape = 'u8[65536]{0}', space=vmem, size = 0x10000, scoped, tag = 'output window, operand 1, single buffered']
    #allocation12 [shape = 's32[1]{0}', space=sflag, size = 0x4, scoped, tag = 'scoped memory for tpu_custom_call.1']
    %14 = vsyncpa [#allocation3], 0
    %15 = vsyncpa [#allocation6], 0
    %16 = vsyncpa [#allocation9], 0
    %17 = vsyncpa [#allocation4], 0
    %18 = vsyncpa [#allocation12], 0
    // Predicated region
    $region2: #{tpu_custom_call.1} parent=1 // pred_check
      _
    $region3: #{tpu_custom_call.1} parent=1 // pred_check_branch
      %20 = sbr.rel (0) target = $region5
    $region4: #{tpu_custom_call.1} parent=1 // pred_region
      %22 = vsyncadd [#allocation3], 0
      %s23 = sshll.u32 %s0, 4
      %s24 = int_to_ptr.hbm [resolvable:$true] %s23
      %s25 = sshll.u32 [#allocation2], 4
      %s26 = int_to_ptr.vmem [resolvable:$true] %s25
      %31 = dma.hbm_to_vmem [thread:$0]  %s24, 512, %s26, [#allocation3], 128, 128, 8
    $region5: #{tpu_custom_call.1} parent=1 // pred_fallthru
      _
    // Predicated region
    $region6: #{tpu_custom_call.1} parent=1 // pred_check
      _
    $region7: #{tpu_custom_call.1} parent=1 // pred_check_branch
      %33 = sbr.rel (0) target = $region9
    $region8: #{tpu_custom_call.1} parent=1 // pred_region
      %35 = vsyncadd [#allocation6], 0
      %s36 = sshll.u32 %s1, 4
      %s37 = int_to_ptr.hbm [resolvable:$true] %s36
      %s38 = sshll.u32 [#allocation5], 4
      %s39 = int_to_ptr.vmem [resolvable:$true] %s38
      %44 = dma.hbm_to_vmem [thread:$0]  %s37, 512, %s39, [#allocation6], 128, 128, 8
    $region9: #{tpu_custom_call.1} parent=1 // pred_fallthru
      _
    // Predicated region
    $region10: #{tpu_custom_call.1} parent=1 // pred_check
      _
    $region11: #{tpu_custom_call.1} parent=1 // pred_check_branch
      %46 = sbr.rel (0) target = $region13
    $region12: #{tpu_custom_call.1} parent=1 // pred_region
      %48 = vsyncadd [#allocation6], 0
      %s49 = sshll.u32 %s2, 4
      %s50 = int_to_ptr.hbm [resolvable:$true] %s49
      %s51 = sshll.u32 [#allocation7], 4
      %s52 = int_to_ptr.vmem [resolvable:$true] %s51
      %57 = dma.hbm_to_vmem [thread:$0]  %s50, 512, %s52, [#allocation6], 128, 128, 8
    $region13: #{tpu_custom_call.1} parent=1 // pred_fallthru
      _
    // Predicated region
    $region14: #{tpu_custom_call.1} parent=1 // pred_check
      _
    $region15: #{tpu_custom_call.1} parent=1 // pred_check_branch
      %59 = sbr.rel (0) target = $region17
    $region16: #{tpu_custom_call.1} parent=1 // pred_region
      _
    $region17: #{tpu_custom_call.1} parent=1 // pred_fallthru
      _
    // Predicated region
    $region18: #{tpu_custom_call.1} parent=1 // pred_check
      _
    $region19: #{tpu_custom_call.1} parent=1 // pred_check_branch
      %61 = sbr.rel (0) target = $region21
    $region20: #{tpu_custom_call.1} parent=1 // pred_region
      %63 = vsyncadd [#allocation9], 0
      %s64 = sshll.u32 %s4, 4
      %s65 = int_to_ptr.hbm [resolvable:$true] %s64
      %s66 = sshll.u32 [#allocation8], 4
      %s67 = int_to_ptr.vmem [resolvable:$true] %s66
      %72 = dma.hbm_to_vmem [thread:$0]  %s65, 512, %s67, [#allocation9], 128, 128, 8
    $region21: #{tpu_custom_call.1} parent=1 // pred_fallthru
      _
    // Predicated region
    $region22: #{tpu_custom_call.1} parent=1 // pred_check
      _
    $region23: #{tpu_custom_call.1} parent=1 // pred_check_branch
      %74 = sbr.rel (0) target = $region25
    $region24: #{tpu_custom_call.1} parent=1 // pred_region
      _
    $region25: #{tpu_custom_call.1} parent=1 // pred_fallthru
      _
    // Predicated region
    $region26: #{tpu_custom_call.1} parent=1 // pred_check
      _
    $region27: #{tpu_custom_call.1} parent=1 // pred_check_branch
      %76 = sbr.rel (0) target = $region29
    $region28: #{tpu_custom_call.1} parent=1 // pred_region
      _
    $region29: #{tpu_custom_call.1} parent=1 // pred_fallthru
      _
    // Predicated region
    $region30: #{tpu_custom_call.1} parent=1 // pred_check
      _
    $region31: #{tpu_custom_call.1} parent=1 // pred_check_branch
      %78 = sbr.rel (0) target = $region33
    $region32: #{tpu_custom_call.1} parent=1 // pred_region
      %80 = dma.done [#allocation3], 512
    $region33: #{tpu_custom_call.1} parent=1 // pred_fallthru
      _
    // Predicated region
    $region34: #{tpu_custom_call.1} parent=1 // pred_check
      _
    $region35: #{tpu_custom_call.1} parent=1 // pred_check_branch
      %82 = sbr.rel (0) target = $region37
    $region36: #{tpu_custom_call.1} parent=1 // pred_region
      %84 = dma.done [#allocation6], 512
    $region37: #{tpu_custom_call.1} parent=1 // pred_fallthru
      _
    // Predicated region
    $region38: #{tpu_custom_call.1} parent=1 // pred_check
      _
    $region39: #{tpu_custom_call.1} parent=1 // pred_check_branch
      %86 = sbr.rel (0) target = $region41
    $region40: #{tpu_custom_call.1} parent=1 // pred_region
      %88 = dma.done [#allocation6], 512
    $region41: #{tpu_custom_call.1} parent=1 // pred_fallthru
      _
    // Predicated region
    $region42: #{tpu_custom_call.1} parent=1 // pred_check
      _
    $region43: #{tpu_custom_call.1} parent=1 // pred_check_branch
      %90 = sbr.rel (0) target = $region45
    $region44: #{tpu_custom_call.1} parent=1 // pred_region
      %92 = dma.done [#allocation9], 512
    $region45: #{tpu_custom_call.1} parent=1 // pred_fallthru
      _
    %v93 = vld [vmem:[#allocation2] sm:$0xff]
    %v94 = vld [vmem:[#allocation2 + $0x8] sm:$0xff]
    %v95 = vld [vmem:[#allocation2 + $0x10] sm:$0xff]
    %v96 = vld [vmem:[#allocation2 + $0x18] sm:$0xff]
    %v97 = vld [vmem:[#allocation5] sm:$0xff]
    %v98 = vld [vmem:[#allocation5 + $0x8] sm:$0xff]
    %v99 = vld [vmem:[#allocation5 + $0x10] sm:$0xff]
    %v100 = vld [vmem:[#allocation5 + $0x18] sm:$0xff]
    %v101 = vld [vmem:[#allocation7] sm:$0xff]
    %v102 = vld [vmem:[#allocation7 + $0x8] sm:$0xff]
    %v103 = vld [vmem:[#allocation7 + $0x10] sm:$0xff]
    %v104 = vld [vmem:[#allocation7 + $0x18] sm:$0xff]
    %v105 = vld [vmem:[%s3] sm:$0x1]
    %v107 = vperm.slane %v105, 0
    %vm109 = vcmask 261120
    %v111 = vsel %vm109, %v93, 0
    %v114 = vsel %vm109, %v94, 0
    %v117 = vsel %vm109, %v95, 0
    %v120 = vsel %vm109, %v96, 0
    %v123 = vsel %vm109, %v97, 0
    %v126 = vsel %vm109, %v98, 0
    %v129 = vsel %vm109, %v99, 0
    %v132 = vsel %vm109, %v100, 0
    %134 = vmatpush.msra.mxu0 0.0
    %135 = vmatpush.msra.mxu0 0.0
    %136 = vmatpush.msra.mxu0 0.0
    %137 = vmatpush.msra.mxu0 0.0
    %138 = vmatpush.msra.mxu0 0.0
    %139 = vmatpush.msra.mxu0 0.0
    %140 = vmatpush.msra.mxu0 0.0
    %141 = vmatpush.msra.mxu0 0.0
    %142 = vmatpush.msra.mxu0 0.0
    %143 = vmatpush.msra.mxu0 0.0
    %144 = vmatpush.msra.mxu0 0.0
    %145 = vmatpush.msra.mxu0 0.0
    %146 = vmatpush.msra.mxu0 %v104
    %147 = vmatpush.msra.mxu0 %v103
    %148 = vmatpush.msra.mxu0 %v102
    %149 = vmatpush.msra.mxu0 %v101
    %150 = vmatmul.f32.gmra.mxu0 %v111
    %v151 = vpop.f32.mrf.mxu0
    %v152 = vadd.f32 %v107, %v151
    %153 = vmatmul.f32.gmra.mxu0 %v114
    %v154 = vpop.f32.mrf.mxu0
    %v155 = vadd.f32 %v107, %v154
    %156 = vmatmul.f32.gmra.mxu0 %v117
    %v157 = vpop.f32.mrf.mxu0
    %v158 = vadd.f32 %v107, %v157
    %159 = vmatmul.f32.gmra.mxu0 %v120
    %v160 = vpop.f32.mrf.mxu0
    %v161 = vadd.f32 %v107, %v160
    %162 = vmatmul.f32.gmra.mxu0 %v123
    %v163 = vpop.f32.mrf.mxu0
    %v164 = vadd.f32 %v107, %v163
    %165 = vmatmul.f32.gmra.mxu0 %v126
    %v166 = vpop.f32.mrf.mxu0
    %v167 = vadd.f32 %v107, %v166
    %168 = vmatmul.f32.gmra.mxu0 %v129
    %v169 = vpop.f32.mrf.mxu0
    %v170 = vadd.f32 %v107, %v169
    %171 = vmatmul.f32.gmra.mxu0 %v132
    %v172 = vpop.f32.mrf.mxu0
    %v173 = vadd.f32 %v107, %v172
    %174 = vdwg.mxu0
    %176 = vrot.lane.b32.xlu0 %v164, 96
    %v177 = vpop.permute.xlu0 %176
    %vm178 = vcmask 64512
    %v180 = vsel %vm178, %v152, 0
    %v182 = vsel %vm178, %v177, 0
    %184 = vmatpush.xpose.msra.mxu0 0.0
    %185 = vmatpush.xpose.msra.mxu0 0.0
    %186 = vmatpush.xpose.msra.mxu0 0.0
    %187 = vmatpush.xpose.msra.mxu0 0.0
    %188 = vmatpush.xpose.msra.mxu0 0.0
    %189 = vmatpush.xpose.msra.mxu0 0.0
    %190 = vmatpush.xpose.msra.mxu0 0.0
    %191 = vmatpush.xpose.msra.mxu0 0.0
    %192 = vmatpush.xpose.msra.mxu0 0.0
    %193 = vmatpush.xpose.msra.mxu0 0.0
    %194 = vmatpush.xpose.msra.mxu0 0.0
    %195 = vmatpush.xpose.msra.mxu0 0.0
    %196 = vmatpush.xpose.msra.mxu0 0.0
    %197 = vmatpush.xpose.msra.mxu0 0.0
    %198 = vmatpush.xpose.msra.mxu0 0.0
    %199 = vmatpush.xpose.msra.mxu0 %v182
    %200 = vmatmul.f32.gmra.mxu0 %v180
    %v201 = vpop.f32.mrf.mxu0
    %v202 = vadd.f32 0.0, %v201
    %203 = vdwg.mxu0
    %205 = vrot.lane.b32.xlu0 %v167, 96
    %v206 = vpop.permute.xlu0 %205
    %v208 = vsel %vm178, %v155, 0
    %v210 = vsel %vm178, %v206, 0
    %212 = vmatpush.xpose.msra.mxu0 0.0
    %213 = vmatpush.xpose.msra.mxu0 0.0
    %214 = vmatpush.xpose.msra.mxu0 0.0
    %215 = vmatpush.xpose.msra.mxu0 0.0
    %216 = vmatpush.xpose.msra.mxu0 0.0
    %217 = vmatpush.xpose.msra.mxu0 0.0
    %218 = vmatpush.xpose.msra.mxu0 0.0
    %219 = vmatpush.xpose.msra.mxu0 0.0
    %220 = vmatpush.xpose.msra.mxu0 0.0
    %221 = vmatpush.xpose.msra.mxu0 0.0
    %222 = vmatpush.xpose.msra.mxu0 0.0
    %223 = vmatpush.xpose.msra.mxu0 0.0
    %224 = vmatpush.xpose.msra.mxu0 0.0
    %225 = vmatpush.xpose.msra.mxu0 0.0
    %226 = vmatpush.xpose.msra.mxu0 0.0
    %227 = vmatpush.xpose.msra.mxu0 %v210
    %228 = vmatmul.f32.gmra.mxu0 %v208
    %v229 = vpop.f32.mrf.mxu0
    %v230 = vadd.f32 0.0, %v229
    %231 = vdwg.mxu0
    %233 = vrot.lane.b32.xlu0 %v170, 96
    %v234 = vpop.permute.xlu0 %233
    %v236 = vsel %vm178, %v158, 0
    %v238 = vsel %vm178, %v234, 0
    %240 = vmatpush.xpose.msra.mxu0 0.0
    %241 = vmatpush.xpose.msra.mxu0 0.0
    %242 = vmatpush.xpose.msra.mxu0 0.0
    %243 = vmatpush.xpose.msra.mxu0 0.0
    %244 = vmatpush.xpose.msra.mxu0 0.0
    %245 = vmatpush.xpose.msra.mxu0 0.0
    %246 = vmatpush.xpose.msra.mxu0 0.0
    %247 = vmatpush.xpose.msra.mxu0 0.0
    %248 = vmatpush.xpose.msra.mxu0 0.0
    %249 = vmatpush.xpose.msra.mxu0 0.0
    %250 = vmatpush.xpose.msra.mxu0 0.0
    %251 = vmatpush.xpose.msra.mxu0 0.0
    %252 = vmatpush.xpose.msra.mxu0 0.0
    %253 = vmatpush.xpose.msra.mxu0 0.0
    %254 = vmatpush.xpose.msra.mxu0 0.0
    %255 = vmatpush.xpose.msra.mxu0 %v238
    %256 = vmatmul.f32.gmra.mxu0 %v236
    %v257 = vpop.f32.mrf.mxu0
    %v258 = vadd.f32 0.0, %v257
    %259 = vdwg.mxu0
    %261 = vrot.lane.b32.xlu0 %v173, 96
    %v262 = vpop.permute.xlu0 %261
    %v264 = vsel %vm178, %v161, 0
    %v266 = vsel %vm178, %v262, 0
    %268 = vmatpush.xpose.msra.mxu0 0.0
    %269 = vmatpush.xpose.msra.mxu0 0.0
    %270 = vmatpush.xpose.msra.mxu0 0.0
    %271 = vmatpush.xpose.msra.mxu0 0.0
    %272 = vmatpush.xpose.msra.mxu0 0.0
    %273 = vmatpush.xpose.msra.mxu0 0.0
    %274 = vmatpush.xpose.msra.mxu0 0.0
    %275 = vmatpush.xpose.msra.mxu0 0.0
    %276 = vmatpush.xpose.msra.mxu0 0.0
    %277 = vmatpush.xpose.msra.mxu0 0.0
    %278 = vmatpush.xpose.msra.mxu0 0.0
    %279 = vmatpush.xpose.msra.mxu0 0.0
    %280 = vmatpush.xpose.msra.mxu0 0.0
    %281 = vmatpush.xpose.msra.mxu0 0.0
    %282 = vmatpush.xpose.msra.mxu0 0.0
    %283 = vmatpush.xpose.msra.mxu0 %v266
    %284 = vmatmul.f32.gmra.mxu0 %v264
    %v285 = vpop.f32.mrf.mxu0
    %v286 = vadd.f32 0.0, %v285
    %287 = vdwg.mxu0
    %288 = vst.msk [vmem:[#allocation11] sm:$0xff] %vm178, %v202
    %289 = vst.msk [vmem:[#allocation11 + $0x20] sm:$0xff] %vm178, %v230
    %290 = vst.msk [vmem:[#allocation11 + $0x40] sm:$0xff] %vm178, %v258
    %291 = vst.msk [vmem:[#allocation11 + $0x60] sm:$0xff] %vm178, %v286
    %v292 = vsel %vm178, %v202, -inf
    %293 = vmax.xlane.f32.xlu0 %v292
    %v294 = vpop.xlane.xlu0 %293
    %v295 = vsel %vm178, %v230, -inf
    %296 = vmax.xlane.f32.xlu0 %v295
    %v297 = vpop.xlane.xlu0 %296
    %v298 = vsel %vm178, %v258, -inf
    %299 = vmax.xlane.f32.xlu0 %v298
    %v300 = vpop.xlane.xlu0 %299
    %v301 = vsel %vm178, %v286, -inf
    %302 = vmax.xlane.f32.xlu0 %v301
    %v303 = vpop.xlane.xlu0 %302
    %v304 = vsub.f32 %v202, %v294
    %v305 = vsub.f32 %v230, %v297
    %v306 = vsub.f32 %v258, %v300
    %v307 = vsub.f32 %v286, %v303
    %v308 = vmul.f32 %v304, 1.442695
    %v309 = vpow.pop %v308
    %v310 = vmul.f32 %v305, 1.442695
    %v311 = vpow.pop %v310
    %v312 = vmul.f32 %v306, 1.442695
    %v313 = vpow.pop %v312
    %v314 = vmul.f32 %v307, 1.442695
    %v315 = vpow.pop %v314
    %v316 = vsel %vm178, %v309, 0.0
    %317 = vadd.xlane.f32.xlu0 %v316
    %v318 = vpop.xlane.xlu0 %317
    %v319 = vsel %vm178, %v311, 0.0
    %320 = vadd.xlane.f32.xlu0 %v319
    %v321 = vpop.xlane.xlu0 %320
    %v322 = vsel %vm178, %v313, 0.0
    %323 = vadd.xlane.f32.xlu0 %v322
    %v324 = vpop.xlane.xlu0 %323
    %v325 = vsel %vm178, %v315, 0.0
    %326 = vadd.xlane.f32.xlu0 %v325
    %v327 = vpop.xlane.xlu0 %326
    %v328 = vrcp.pop %v318
    %v329 = vmul.f32 %v318, %v328
    %v330 = vsub.f32 1.0, %v329
    %v331 = vmul.f32 %v328, %v330
    %v332 = vadd.f32 %v328, %v331
    %vm333 = vweird.f32 %v318
    %vm334 = vweird.f32 %v328
    %vm335 = vmor %vm333, %vm334
    %v336 = vsel %vm335, %v328, %v332
    %v337 = vand.u32 2147483647, %v318
    %vm338 = vcmp.eq.f32.partialorder %v337, 8.507059e+37
    %v339 = vand.u32 %v318, 2147483648
    %v340 = vor.u32 1.1754944e-38, %v339
    %v341 = vsel %vm338, %v340, %v336
    %v342 = vrcp.pop %v321
    %v343 = vmul.f32 %v321, %v342
    %v344 = vsub.f32 1.0, %v343
    %v345 = vmul.f32 %v342, %v344
    %v346 = vadd.f32 %v342, %v345
    %vm347 = vweird.f32 %v321
    %vm348 = vweird.f32 %v342
    %vm349 = vmor %vm347, %vm348
    %v350 = vsel %vm349, %v342, %v346
    %v351 = vand.u32 2147483647, %v321
    %vm352 = vcmp.eq.f32.partialorder %v351, 8.507059e+37
    %v353 = vand.u32 %v321, 2147483648
    %v354 = vor.u32 1.1754944e-38, %v353
    %v355 = vsel %vm352, %v354, %v350
    %v356 = vrcp.pop %v324
    %v357 = vmul.f32 %v324, %v356
    %v358 = vsub.f32 1.0, %v357
    %v359 = vmul.f32 %v356, %v358
    %v360 = vadd.f32 %v356, %v359
    %vm361 = vweird.f32 %v324
    %vm362 = vweird.f32 %v356
    %vm363 = vmor %vm361, %vm362
    %v364 = vsel %vm363, %v356, %v360
    %v365 = vand.u32 2147483647, %v324
    %vm366 = vcmp.eq.f32.partialorder %v365, 8.507059e+37
    %v367 = vand.u32 %v324, 2147483648
    %v368 = vor.u32 1.1754944e-38, %v367
    %v369 = vsel %vm366, %v368, %v364
    %v370 = vrcp.pop %v327
    %v371 = vmul.f32 %v327, %v370
    %v372 = vsub.f32 1.0, %v371
    %v373 = vmul.f32 %v370, %v372
    %v374 = vadd.f32 %v370, %v373
    %vm375 = vweird.f32 %v327
    %vm376 = vweird.f32 %v370
    %vm377 = vmor %vm375, %vm376
    %v378 = vsel %vm377, %v370, %v374
    %v379 = vand.u32 2147483647, %v327
    %vm380 = vcmp.eq.f32.partialorder %v379, 8.507059e+37
    %v381 = vand.u32 %v327, 2147483648
    %v382 = vor.u32 1.1754944e-38, %v381
    %v383 = vsel %vm380, %v382, %v378
    %v384 = vmul.f32 %v309, %v341
    %v385 = vmul.f32 %v311, %v355
    %v386 = vmul.f32 %v313, %v369
    %v387 = vmul.f32 %v315, %v383
    %388 = vrot.lane.b32.xlu0 %v164, 64
    %v389 = vpop.permute.xlu0 %388
    %v392 = vsel %vm178, %v384, 0
    %394 = vmatpush.msra.mxu0 0.0
    %395 = vmatpush.msra.mxu0 0.0
    %396 = vmatpush.msra.mxu0 0.0
    %397 = vmatpush.msra.mxu0 0.0
    %398 = vmatpush.msra.mxu0 0.0
    %399 = vmatpush.msra.mxu0 0.0
    %400 = vmatpush.msra.mxu0 0.0
    %401 = vmatpush.msra.mxu0 0.0
    %402 = vmatpush.msra.mxu0 0.0
    %403 = vmatpush.msra.mxu0 0.0
    %404 = vmatpush.msra.mxu0 0.0
    %405 = vmatpush.msra.mxu0 0.0
    %406 = vmatpush.msra.mxu0 0.0
    %407 = vmatpush.msra.mxu0 0.0
    %408 = vmatpush.msra.mxu0 0.0
    %409 = vmatpush.msra.mxu0 %v389
    %410 = vmatmul.f32.gmra.mxu0 %v392
    %v411 = vpop.f32.mrf.mxu0
    %v412 = vadd.f32 0.0, %v411
    %413 = vdwg.mxu0
    %414 = vrot.lane.b32.xlu0 %v167, 64
    %v415 = vpop.permute.xlu0 %414
    %v418 = vsel %vm178, %v385, 0
    %420 = vmatpush.msra.mxu0 0.0
    %421 = vmatpush.msra.mxu0 0.0
    %422 = vmatpush.msra.mxu0 0.0
    %423 = vmatpush.msra.mxu0 0.0
    %424 = vmatpush.msra.mxu0 0.0
    %425 = vmatpush.msra.mxu0 0.0
    %426 = vmatpush.msra.mxu0 0.0
    %427 = vmatpush.msra.mxu0 0.0
    %428 = vmatpush.msra.mxu0 0.0
    %429 = vmatpush.msra.mxu0 0.0
    %430 = vmatpush.msra.mxu0 0.0
    %431 = vmatpush.msra.mxu0 0.0
    %432 = vmatpush.msra.mxu0 0.0
    %433 = vmatpush.msra.mxu0 0.0
    %434 = vmatpush.msra.mxu0 0.0
    %435 = vmatpush.msra.mxu0 %v415
    %436 = vmatmul.f32.gmra.mxu0 %v418
    %v437 = vpop.f32.mrf.mxu0
    %v438 = vadd.f32 0.0, %v437
    %439 = vdwg.mxu0
    %440 = vrot.lane.b32.xlu0 %v170, 64
    %v441 = vpop.permute.xlu0 %440
    %v444 = vsel %vm178, %v386, 0
    %446 = vmatpush.msra.mxu0 0.0
    %447 = vmatpush.msra.mxu0 0.0
    %448 = vmatpush.msra.mxu0 0.0
    %449 = vmatpush.msra.mxu0 0.0
    %450 = vmatpush.msra.mxu0 0.0
    %451 = vmatpush.msra.mxu0 0.0
    %452 = vmatpush.msra.mxu0 0.0
    %453 = vmatpush.msra.mxu0 0.0
    %454 = vmatpush.msra.mxu0 0.0
    %455 = vmatpush.msra.mxu0 0.0
    %456 = vmatpush.msra.mxu0 0.0
    %457 = vmatpush.msra.mxu0 0.0
    %458 = vmatpush.msra.mxu0 0.0
    %459 = vmatpush.msra.mxu0 0.0
    %460 = vmatpush.msra.mxu0 0.0
    %461 = vmatpush.msra.mxu0 %v441
    %462 = vmatmul.f32.gmra.mxu0 %v444
    %v463 = vpop.f32.mrf.mxu0
    %v464 = vadd.f32 0.0, %v463
    %465 = vdwg.mxu0
    %466 = vrot.lane.b32.xlu0 %v173, 64
    %v467 = vpop.permute.xlu0 %466
    %v470 = vsel %vm178, %v387, 0
    %472 = vmatpush.msra.mxu0 0.0
    %473 = vmatpush.msra.mxu0 0.0
    %474 = vmatpush.msra.mxu0 0.0
    %475 = vmatpush.msra.mxu0 0.0
    %476 = vmatpush.msra.mxu0 0.0
    %477 = vmatpush.msra.mxu0 0.0
    %478 = vmatpush.msra.mxu0 0.0
    %479 = vmatpush.msra.mxu0 0.0
    %480 = vmatpush.msra.mxu0 0.0
    %481 = vmatpush.msra.mxu0 0.0
    %482 = vmatpush.msra.mxu0 0.0
    %483 = vmatpush.msra.mxu0 0.0
    %484 = vmatpush.msra.mxu0 0.0
    %485 = vmatpush.msra.mxu0 0.0
    %486 = vmatpush.msra.mxu0 0.0
    %487 = vmatpush.msra.mxu0 %v467
    %488 = vmatmul.f32.gmra.mxu0 %v470
    %v489 = vpop.f32.mrf.mxu0
    %v490 = vadd.f32 0.0, %v489
    %491 = vdwg.mxu0
    %492 = vrot.lane.b32.xlu0 %v152, 120
    %v493 = vpop.permute.xlu0 %492
    %494 = vrot.lane.b32.xlu0 %v164, 88
    %v495 = vpop.permute.xlu0 %494
    %v496 = vsel %vm178, %v493, 0
    %v498 = vsel %vm178, %v495, 0
    %500 = vmatpush.xpose.msra.mxu0 0.0
    %501 = vmatpush.xpose.msra.mxu0 0.0
    %502 = vmatpush.xpose.msra.mxu0 0.0
    %503 = vmatpush.xpose.msra.mxu0 0.0
    %504 = vmatpush.xpose.msra.mxu0 0.0
    %505 = vmatpush.xpose.msra.mxu0 0.0
    %506 = vmatpush.xpose.msra.mxu0 0.0
    %507 = vmatpush.xpose.msra.mxu0 0.0
    %508 = vmatpush.xpose.msra.mxu0 0.0
    %509 = vmatpush.xpose.msra.mxu0 0.0
    %510 = vmatpush.xpose.msra.mxu0 0.0
    %511 = vmatpush.xpose.msra.mxu0 0.0
    %512 = vmatpush.xpose.msra.mxu0 0.0
    %513 = vmatpush.xpose.msra.mxu0 0.0
    %514 = vmatpush.xpose.msra.mxu0 0.0
    %515 = vmatpush.xpose.msra.mxu0 %v498
    %516 = vmatmul.f32.gmra.mxu0 %v496
    %v517 = vpop.f32.mrf.mxu0
    %v518 = vadd.f32 0.0, %v517
    %519 = vdwg.mxu0
    %520 = vrot.lane.b32.xlu0 %v155, 120
    %v521 = vpop.permute.xlu0 %520
    %522 = vrot.lane.b32.xlu0 %v167, 88
    %v523 = vpop.permute.xlu0 %522
    %v524 = vsel %vm178, %v521, 0
    %v526 = vsel %vm178, %v523, 0
    %528 = vmatpush.xpose.msra.mxu0 0.0
    %529 = vmatpush.xpose.msra.mxu0 0.0
    %530 = vmatpush.xpose.msra.mxu0 0.0
    %531 = vmatpush.xpose.msra.mxu0 0.0
    %532 = vmatpush.xpose.msra.mxu0 0.0
    %533 = vmatpush.xpose.msra.mxu0 0.0
    %534 = vmatpush.xpose.msra.mxu0 0.0
    %535 = vmatpush.xpose.msra.mxu0 0.0
    %536 = vmatpush.xpose.msra.mxu0 0.0
    %537 = vmatpush.xpose.msra.mxu0 0.0
    %538 = vmatpush.xpose.msra.mxu0 0.0
    %539 = vmatpush.xpose.msra.mxu0 0.0
    %540 = vmatpush.xpose.msra.mxu0 0.0
    %541 = vmatpush.xpose.msra.mxu0 0.0
    %542 = vmatpush.xpose.msra.mxu0 0.0
    %543 = vmatpush.xpose.msra.mxu0 %v526
    %544 = vmatmul.f32.gmra.mxu0 %v524
    %v545 = vpop.f32.mrf.mxu0
    %v546 = vadd.f32 0.0, %v545
    %547 = vdwg.mxu0
    %548 = vrot.lane.b32.xlu0 %v158, 120
    %v549 = vpop.permute.xlu0 %548
    %550 = vrot.lane.b32.xlu0 %v170, 88
    %v551 = vpop.permute.xlu0 %550
    %v552 = vsel %vm178, %v549, 0
    %v554 = vsel %vm178, %v551, 0
    %556 = vmatpush.xpose.msra.mxu0 0.0
    %557 = vmatpush.xpose.msra.mxu0 0.0
    %558 = vmatpush.xpose.msra.mxu0 0.0
    %559 = vmatpush.xpose.msra.mxu0 0.0
    %560 = vmatpush.xpose.msra.mxu0 0.0
    %561 = vmatpush.xpose.msra.mxu0 0.0
    %562 = vmatpush.xpose.msra.mxu0 0.0
    %563 = vmatpush.xpose.msra.mxu0 0.0
    %564 = vmatpush.xpose.msra.mxu0 0.0
    %565 = vmatpush.xpose.msra.mxu0 0.0
    %566 = vmatpush.xpose.msra.mxu0 0.0
    %567 = vmatpush.xpose.msra.mxu0 0.0
    %568 = vmatpush.xpose.msra.mxu0 0.0
    %569 = vmatpush.xpose.msra.mxu0 0.0
    %570 = vmatpush.xpose.msra.mxu0 0.0
    %571 = vmatpush.xpose.msra.mxu0 %v554
    %572 = vmatmul.f32.gmra.mxu0 %v552
    %v573 = vpop.f32.mrf.mxu0
    %v574 = vadd.f32 0.0, %v573
    %575 = vdwg.mxu0
    %576 = vrot.lane.b32.xlu0 %v161, 120
    %v577 = vpop.permute.xlu0 %576
    %578 = vrot.lane.b32.xlu0 %v173, 88
    %v579 = vpop.permute.xlu0 %578
    %v580 = vsel %vm178, %v577, 0
    %v582 = vsel %vm178, %v579, 0
    %584 = vmatpush.xpose.msra.mxu0 0.0
    %585 = vmatpush.xpose.msra.mxu0 0.0
    %586 = vmatpush.xpose.msra.mxu0 0.0
    %587 = vmatpush.xpose.msra.mxu0 0.0
    %588 = vmatpush.xpose.msra.mxu0 0.0
    %589 = vmatpush.xpose.msra.mxu0 0.0
    %590 = vmatpush.xpose.msra.mxu0 0.0
    %591 = vmatpush.xpose.msra.mxu0 0.0
    %592 = vmatpush.xpose.msra.mxu0 0.0
    %593 = vmatpush.xpose.msra.mxu0 0.0
    %594 = vmatpush.xpose.msra.mxu0 0.0
    %595 = vmatpush.xpose.msra.mxu0 0.0
    %596 = vmatpush.xpose.msra.mxu0 0.0
    %597 = vmatpush.xpose.msra.mxu0 0.0
    %598 = vmatpush.xpose.msra.mxu0 0.0
    %599 = vmatpush.xpose.msra.mxu0 %v582
    %600 = vmatmul.f32.gmra.mxu0 %v580
    %v601 = vpop.f32.mrf.mxu0
    %v602 = vadd.f32 0.0, %v601
    %603 = vdwg.mxu0
    %s604 = scalar_lea.vmem [#allocation11], 8
    %605 = vst.msk [vmem:[%s604] sm:$0xff] %vm178, %v518
    %606 = vst.msk [vmem:[%s604 + $0x20] sm:$0xff] %vm178, %v546
    %607 = vst.msk [vmem:[%s604 + $0x40] sm:$0xff] %vm178, %v574
    %608 = vst.msk [vmem:[%s604 + $0x60] sm:$0xff] %vm178, %v602
    %v609 = vsel %vm178, %v518, -inf
    %610 = vmax.xlane.f32.xlu0 %v609
    %v611 = vpop.xlane.xlu0 %610
    %v612 = vsel %vm178, %v546, -inf
    %613 = vmax.xlane.f32.xlu0 %v612
    %v614 = vpop.xlane.xlu0 %613
    %v615 = vsel %vm178, %v574, -inf
    %616 = vmax.xlane.f32.xlu0 %v615
    %v617 = vpop.xlane.xlu0 %616
    %v618 = vsel %vm178, %v602, -inf
    %619 = vmax.xlane.f32.xlu0 %v618
    %v620 = vpop.xlane.xlu0 %619
    %v621 = vsub.f32 %v518, %v611
    %v622 = vsub.f32 %v546, %v614
    %v623 = vsub.f32 %v574, %v617
    %v624 = vsub.f32 %v602, %v620
    %v625 = vmul.f32 %v621, 1.442695
    %v626 = vpow.pop %v625
    %v627 = vmul.f32 %v622, 1.442695
    %v628 = vpow.pop %v627
    %v629 = vmul.f32 %v623, 1.442695
    %v630 = vpow.pop %v629
    %v631 = vmul.f32 %v624, 1.442695
    %v632 = vpow.pop %v631
    %v633 = vsel %vm178, %v626, 0.0
    %634 = vadd.xlane.f32.xlu0 %v633
    %v635 = vpop.xlane.xlu0 %634
    %v636 = vsel %vm178, %v628, 0.0
    %637 = vadd.xlane.f32.xlu0 %v636
    %v638 = vpop.xlane.xlu0 %637
    %v639 = vsel %vm178, %v630, 0.0
    %640 = vadd.xlane.f32.xlu0 %v639
    %v641 = vpop.xlane.xlu0 %640
    %v642 = vsel %vm178, %v632, 0.0
    %643 = vadd.xlane.f32.xlu0 %v642
    %v644 = vpop.xlane.xlu0 %643
    %v645 = vrcp.pop %v635
    %v646 = vmul.f32 %v635, %v645
    %v647 = vsub.f32 1.0, %v646
    %v648 = vmul.f32 %v645, %v647
    %v649 = vadd.f32 %v645, %v648
    %vm650 = vweird.f32 %v635
    %vm651 = vweird.f32 %v645
    %vm652 = vmor %vm650, %vm651
    %v653 = vsel %vm652, %v645, %v649
    %v654 = vand.u32 2147483647, %v635
    %vm655 = vcmp.eq.f32.partialorder %v654, 8.507059e+37
    %v656 = vand.u32 %v635, 2147483648
    %v657 = vor.u32 1.1754944e-38, %v656
    %v658 = vsel %vm655, %v657, %v653
    %v659 = vrcp.pop %v638
    %v660 = vmul.f32 %v638, %v659
    %v661 = vsub.f32 1.0, %v660
    %v662 = vmul.f32 %v659, %v661
    %v663 = vadd.f32 %v659, %v662
    %vm664 = vweird.f32 %v638
    %vm665 = vweird.f32 %v659
    %vm666 = vmor %vm664, %vm665
    %v667 = vsel %vm666, %v659, %v663
    %v668 = vand.u32 2147483647, %v638
    %vm669 = vcmp.eq.f32.partialorder %v668, 8.507059e+37
    %v670 = vand.u32 %v638, 2147483648
    %v671 = vor.u32 1.1754944e-38, %v670
    %v672 = vsel %vm669, %v671, %v667
    %v673 = vrcp.pop %v641
    %v674 = vmul.f32 %v641, %v673
    %v675 = vsub.f32 1.0, %v674
    %v676 = vmul.f32 %v673, %v675
    %v677 = vadd.f32 %v673, %v676
    %vm678 = vweird.f32 %v641
    %vm679 = vweird.f32 %v673
    %vm680 = vmor %vm678, %vm679
    %v681 = vsel %vm680, %v673, %v677
    %v682 = vand.u32 2147483647, %v641
    %vm683 = vcmp.eq.f32.partialorder %v682, 8.507059e+37
    %v684 = vand.u32 %v641, 2147483648
    %v685 = vor.u32 1.1754944e-38, %v684
    %v686 = vsel %vm683, %v685, %v681
    %v687 = vrcp.pop %v644
    %v688 = vmul.f32 %v644, %v687
    %v689 = vsub.f32 1.0, %v688
    %v690 = vmul.f32 %v687, %v689
    %v691 = vadd.f32 %v687, %v690
    %vm692 = vweird.f32 %v644
    %vm693 = vweird.f32 %v687
    %vm694 = vmor %vm692, %vm693
    %v695 = vsel %vm694, %v687, %v691
    %v696 = vand.u32 2147483647, %v644
    %vm697 = vcmp.eq.f32.partialorder %v696, 8.507059e+37
    %v698 = vand.u32 %v644, 2147483648
    %v699 = vor.u32 1.1754944e-38, %v698
    %v700 = vsel %vm697, %v699, %v695
    %v701 = vmul.f32 %v626, %v658
    %v702 = vmul.f32 %v628, %v672
    %v703 = vmul.f32 %v630, %v686
    %v704 = vmul.f32 %v632, %v700
    %705 = vrot.lane.b32.xlu0 %v164, 56
    %v706 = vpop.permute.xlu0 %705
    %v709 = vsel %vm178, %v701, 0
    %711 = vmatpush.msra.mxu0 0.0
    %712 = vmatpush.msra.mxu0 0.0
    %713 = vmatpush.msra.mxu0 0.0
    %714 = vmatpush.msra.mxu0 0.0
    %715 = vmatpush.msra.mxu0 0.0
    %716 = vmatpush.msra.mxu0 0.0
    %717 = vmatpush.msra.mxu0 0.0
    %718 = vmatpush.msra.mxu0 0.0
    %719 = vmatpush.msra.mxu0 0.0
    %720 = vmatpush.msra.mxu0 0.0
    %721 = vmatpush.msra.mxu0 0.0
    %722 = vmatpush.msra.mxu0 0.0
    %723 = vmatpush.msra.mxu0 0.0
    %724 = vmatpush.msra.mxu0 0.0
    %725 = vmatpush.msra.mxu0 0.0
    %726 = vmatpush.msra.mxu0 %v706
    %727 = vmatmul.f32.gmra.mxu0 %v709
    %v728 = vpop.f32.mrf.mxu0
    %v729 = vadd.f32 0.0, %v728
    %730 = vdwg.mxu0
    %731 = vrot.lane.b32.xlu0 %v167, 56
    %v732 = vpop.permute.xlu0 %731
    %v735 = vsel %vm178, %v702, 0
    %737 = vmatpush.msra.mxu0 0.0
    %738 = vmatpush.msra.mxu0 0.0
    %739 = vmatpush.msra.mxu0 0.0
    %740 = vmatpush.msra.mxu0 0.0
    %741 = vmatpush.msra.mxu0 0.0
    %742 = vmatpush.msra.mxu0 0.0
    %743 = vmatpush.msra.mxu0 0.0
    %744 = vmatpush.msra.mxu0 0.0
    %745 = vmatpush.msra.mxu0 0.0
    %746 = vmatpush.msra.mxu0 0.0
    %747 = vmatpush.msra.mxu0 0.0
    %748 = vmatpush.msra.mxu0 0.0
    %749 = vmatpush.msra.mxu0 0.0
    %750 = vmatpush.msra.mxu0 0.0
    %751 = vmatpush.msra.mxu0 0.0
    %752 = vmatpush.msra.mxu0 %v732
    %753 = vmatmul.f32.gmra.mxu0 %v735
    %v754 = vpop.f32.mrf.mxu0
    %v755 = vadd.f32 0.0, %v754
    %756 = vdwg.mxu0
    %757 = vrot.lane.b32.xlu0 %v170, 56
    %v758 = vpop.permute.xlu0 %757
    %v761 = vsel %vm178, %v703, 0
    %763 = vmatpush.msra.mxu0 0.0
    %764 = vmatpush.msra.mxu0 0.0
    %765 = vmatpush.msra.mxu0 0.0
    %766 = vmatpush.msra.mxu0 0.0
    %767 = vmatpush.msra.mxu0 0.0
    %768 = vmatpush.msra.mxu0 0.0
    %769 = vmatpush.msra.mxu0 0.0
    %770 = vmatpush.msra.mxu0 0.0
    %771 = vmatpush.msra.mxu0 0.0
    %772 = vmatpush.msra.mxu0 0.0
    %773 = vmatpush.msra.mxu0 0.0
    %774 = vmatpush.msra.mxu0 0.0
    %775 = vmatpush.msra.mxu0 0.0
    %776 = vmatpush.msra.mxu0 0.0
    %777 = vmatpush.msra.mxu0 0.0
    %778 = vmatpush.msra.mxu0 %v758
    %779 = vmatmul.f32.gmra.mxu0 %v761
    %v780 = vpop.f32.mrf.mxu0
    %v781 = vadd.f32 0.0, %v780
    %782 = vdwg.mxu0
    %783 = vrot.lane.b32.xlu0 %v173, 56
    %v784 = vpop.permute.xlu0 %783
    %v787 = vsel %vm178, %v704, 0
    %789 = vmatpush.msra.mxu0 0.0
    %790 = vmatpush.msra.mxu0 0.0
    %791 = vmatpush.msra.mxu0 0.0
    %792 = vmatpush.msra.mxu0 0.0
    %793 = vmatpush.msra.mxu0 0.0
    %794 = vmatpush.msra.mxu0 0.0
    %795 = vmatpush.msra.mxu0 0.0
    %796 = vmatpush.msra.mxu0 0.0
    %797 = vmatpush.msra.mxu0 0.0
    %798 = vmatpush.msra.mxu0 0.0
    %799 = vmatpush.msra.mxu0 0.0
    %800 = vmatpush.msra.mxu0 0.0
    %801 = vmatpush.msra.mxu0 0.0
    %802 = vmatpush.msra.mxu0 0.0
    %803 = vmatpush.msra.mxu0 0.0
    %804 = vmatpush.msra.mxu0 %v784
    %805 = vmatmul.f32.gmra.mxu0 %v787
    %v806 = vpop.f32.mrf.mxu0
    %v807 = vadd.f32 0.0, %v806
    %808 = vdwg.mxu0
    %809 = vrot.lane.b32.xlu0 %v152, 112
    %v810 = vpop.permute.xlu0 %809
    %811 = vrot.lane.b32.xlu0 %v164, 80
    %v812 = vpop.permute.xlu0 %811
    %v813 = vsel %vm178, %v810, 0
    %v815 = vsel %vm178, %v812, 0
    %817 = vmatpush.xpose.msra.mxu0 0.0
    %818 = vmatpush.xpose.msra.mxu0 0.0
    %819 = vmatpush.xpose.msra.mxu0 0.0
    %820 = vmatpush.xpose.msra.mxu0 0.0
    %821 = vmatpush.xpose.msra.mxu0 0.0
    %822 = vmatpush.xpose.msra.mxu0 0.0
    %823 = vmatpush.xpose.msra.mxu0 0.0
    %824 = vmatpush.xpose.msra.mxu0 0.0
    %825 = vmatpush.xpose.msra.mxu0 0.0
    %826 = vmatpush.xpose.msra.mxu0 0.0
    %827 = vmatpush.xpose.msra.mxu0 0.0
    %828 = vmatpush.xpose.msra.mxu0 0.0
    %829 = vmatpush.xpose.msra.mxu0 0.0
    %830 = vmatpush.xpose.msra.mxu0 0.0
    %831 = vmatpush.xpose.msra.mxu0 0.0
    %832 = vmatpush.xpose.msra.mxu0 %v815
    %833 = vmatmul.f32.gmra.mxu0 %v813
    %v834 = vpop.f32.mrf.mxu0
    %v835 = vadd.f32 0.0, %v834
    %836 = vdwg.mxu0
    %837 = vrot.lane.b32.xlu0 %v155, 112
    %v838 = vpop.permute.xlu0 %837
    %839 = vrot.lane.b32.xlu0 %v167, 80
    %v840 = vpop.permute.xlu0 %839
    %v841 = vsel %vm178, %v838, 0
    %v843 = vsel %vm178, %v840, 0
    %845 = vmatpush.xpose.msra.mxu0 0.0
    %846 = vmatpush.xpose.msra.mxu0 0.0
    %847 = vmatpush.xpose.msra.mxu0 0.0
    %848 = vmatpush.xpose.msra.mxu0 0.0
    %849 = vmatpush.xpose.msra.mxu0 0.0
    %850 = vmatpush.xpose.msra.mxu0 0.0
    %851 = vmatpush.xpose.msra.mxu0 0.0
    %852 = vmatpush.xpose.msra.mxu0 0.0
    %853 = vmatpush.xpose.msra.mxu0 0.0
    %854 = vmatpush.xpose.msra.mxu0 0.0
    %855 = vmatpush.xpose.msra.mxu0 0.0
    %856 = vmatpush.xpose.msra.mxu0 0.0
    %857 = vmatpush.xpose.msra.mxu0 0.0
    %858 = vmatpush.xpose.msra.mxu0 0.0
    %859 = vmatpush.xpose.msra.mxu0 0.0
    %860 = vmatpush.xpose.msra.mxu0 %v843
    %861 = vmatmul.f32.gmra.mxu0 %v841
    %v862 = vpop.f32.mrf.mxu0
    %v863 = vadd.f32 0.0, %v862
    %864 = vdwg.mxu0
    %865 = vrot.lane.b32.xlu0 %v158, 112
    %v866 = vpop.permute.xlu0 %865
    %867 = vrot.lane.b32.xlu0 %v170, 80
    %v868 = vpop.permute.xlu0 %867
    %v869 = vsel %vm178, %v866, 0
    %v871 = vsel %vm178, %v868, 0
    %873 = vmatpush.xpose.msra.mxu0 0.0
    %874 = vmatpush.xpose.msra.mxu0 0.0
    %875 = vmatpush.xpose.msra.mxu0 0.0
    %876 = vmatpush.xpose.msra.mxu0 0.0
    %877 = vmatpush.xpose.msra.mxu0 0.0
    %878 = vmatpush.xpose.msra.mxu0 0.0
    %879 = vmatpush.xpose.msra.mxu0 0.0
    %880 = vmatpush.xpose.msra.mxu0 0.0
    %881 = vmatpush.xpose.msra.mxu0 0.0
    %882 = vmatpush.xpose.msra.mxu0 0.0
    %883 = vmatpush.xpose.msra.mxu0 0.0
    %884 = vmatpush.xpose.msra.mxu0 0.0
    %885 = vmatpush.xpose.msra.mxu0 0.0
    %886 = vmatpush.xpose.msra.mxu0 0.0
    %887 = vmatpush.xpose.msra.mxu0 0.0
    %888 = vmatpush.xpose.msra.mxu0 %v871
    %889 = vmatmul.f32.gmra.mxu0 %v869
    %v890 = vpop.f32.mrf.mxu0
    %v891 = vadd.f32 0.0, %v890
    %892 = vdwg.mxu0
    %893 = vrot.lane.b32.xlu0 %v161, 112
    %v894 = vpop.permute.xlu0 %893
    %895 = vrot.lane.b32.xlu0 %v173, 80
    %v896 = vpop.permute.xlu0 %895
    %v897 = vsel %vm178, %v894, 0
    %v899 = vsel %vm178, %v896, 0
    %901 = vmatpush.xpose.msra.mxu0 0.0
    %902 = vmatpush.xpose.msra.mxu0 0.0
    %903 = vmatpush.xpose.msra.mxu0 0.0
    %904 = vmatpush.xpose.msra.mxu0 0.0
    %905 = vmatpush.xpose.msra.mxu0 0.0
    %906 = vmatpush.xpose.msra.mxu0 0.0
    %907 = vmatpush.xpose.msra.mxu0 0.0
    %908 = vmatpush.xpose.msra.mxu0 0.0
    %909 = vmatpush.xpose.msra.mxu0 0.0
    %910 = vmatpush.xpose.msra.mxu0 0.0
    %911 = vmatpush.xpose.msra.mxu0 0.0
    %912 = vmatpush.xpose.msra.mxu0 0.0
    %913 = vmatpush.xpose.msra.mxu0 0.0
    %914 = vmatpush.xpose.msra.mxu0 0.0
    %915 = vmatpush.xpose.msra.mxu0 0.0
    %916 = vmatpush.xpose.msra.mxu0 %v899
    %917 = vmatmul.f32.gmra.mxu0 %v897
    %v918 = vpop.f32.mrf.mxu0
    %v919 = vadd.f32 0.0, %v918
    %920 = vdwg.mxu0
    %s921 = scalar_lea.vmem [#allocation11], 16
    %922 = vst.msk [vmem:[%s921] sm:$0xff] %vm178, %v835
    %923 = vst.msk [vmem:[%s921 + $0x20] sm:$0xff] %vm178, %v863
    %924 = vst.msk [vmem:[%s921 + $0x40] sm:$0xff] %vm178, %v891
    %925 = vst.msk [vmem:[%s921 + $0x60] sm:$0xff] %vm178, %v919
    %v926 = vsel %vm178, %v835, -inf
    %927 = vmax.xlane.f32.xlu0 %v926
    %v928 = vpop.xlane.xlu0 %927
    %v929 = vsel %vm178, %v863, -inf
    %930 = vmax.xlane.f32.xlu0 %v929
    %v931 = vpop.xlane.xlu0 %930
    %v932 = vsel %vm178, %v891, -inf
    %933 = vmax.xlane.f32.xlu0 %v932
    %v934 = vpop.xlane.xlu0 %933
    %v935 = vsel %vm178, %v919, -inf
    %936 = vmax.xlane.f32.xlu0 %v935
    %v937 = vpop.xlane.xlu0 %936
    %v938 = vsub.f32 %v835, %v928
    %v939 = vsub.f32 %v863, %v931
    %v940 = vsub.f32 %v891, %v934
    %v941 = vsub.f32 %v919, %v937
    %v942 = vmul.f32 %v938, 1.442695
    %v943 = vpow.pop %v942
    %v944 = vmul.f32 %v939, 1.442695
    %v945 = vpow.pop %v944
    %v946 = vmul.f32 %v940, 1.442695
    %v947 = vpow.pop %v946
    %v948 = vmul.f32 %v941, 1.442695
    %v949 = vpow.pop %v948
    %v950 = vsel %vm178, %v943, 0.0
    %951 = vadd.xlane.f32.xlu0 %v950
    %v952 = vpop.xlane.xlu0 %951
    %v953 = vsel %vm178, %v945, 0.0
    %954 = vadd.xlane.f32.xlu0 %v953
    %v955 = vpop.xlane.xlu0 %954
    %v956 = vsel %vm178, %v947, 0.0
    %957 = vadd.xlane.f32.xlu0 %v956
    %v958 = vpop.xlane.xlu0 %957
    %v959 = vsel %vm178, %v949, 0.0
    %960 = vadd.xlane.f32.xlu0 %v959
    %v961 = vpop.xlane.xlu0 %960
    %v962 = vrcp.pop %v952
    %v963 = vmul.f32 %v952, %v962
    %v964 = vsub.f32 1.0, %v963
    %v965 = vmul.f32 %v962, %v964
    %v966 = vadd.f32 %v962, %v965
    %vm967 = vweird.f32 %v952
    %vm968 = vweird.f32 %v962
    %vm969 = vmor %vm967, %vm968
    %v970 = vsel %vm969, %v962, %v966
    %v971 = vand.u32 2147483647, %v952
    %vm972 = vcmp.eq.f32.partialorder %v971, 8.507059e+37
    %v973 = vand.u32 %v952, 2147483648
    %v974 = vor.u32 1.1754944e-38, %v973
    %v975 = vsel %vm972, %v974, %v970
    %v976 = vrcp.pop %v955
    %v977 = vmul.f32 %v955, %v976
    %v978 = vsub.f32 1.0, %v977
    %v979 = vmul.f32 %v976, %v978
    %v980 = vadd.f32 %v976, %v979
    %vm981 = vweird.f32 %v955
    %vm982 = vweird.f32 %v976
    %vm983 = vmor %vm981, %vm982
    %v984 = vsel %vm983, %v976, %v980
    %v985 = vand.u32 2147483647, %v955
    %vm986 = vcmp.eq.f32.partialorder %v985, 8.507059e+37
    %v987 = vand.u32 %v955, 2147483648
    %v988 = vor.u32 1.1754944e-38, %v987
    %v989 = vsel %vm986, %v988, %v984
    %v990 = vrcp.pop %v958
    %v991 = vmul.f32 %v958, %v990
    %v992 = vsub.f32 1.0, %v991
    %v993 = vmul.f32 %v990, %v992
    %v994 = vadd.f32 %v990, %v993
    %vm995 = vweird.f32 %v958
    %vm996 = vweird.f32 %v990
    %vm997 = vmor %vm995, %vm996
    %v998 = vsel %vm997, %v990, %v994
    %v999 = vand.u32 2147483647, %v958
    %vm1000 = vcmp.eq.f32.partialorder %v999, 8.507059e+37
    %v1001 = vand.u32 %v958, 2147483648
    %v1002 = vor.u32 1.1754944e-38, %v1001
    %v1003 = vsel %vm1000, %v1002, %v998
    %v1004 = vrcp.pop %v961
    %v1005 = vmul.f32 %v961, %v1004
    %v1006 = vsub.f32 1.0, %v1005
    %v1007 = vmul.f32 %v1004, %v1006
    %v1008 = vadd.f32 %v1004, %v1007
    %vm1009 = vweird.f32 %v961
    %vm1010 = vweird.f32 %v1004
    %vm1011 = vmor %vm1009, %vm1010
    %v1012 = vsel %vm1011, %v1004, %v1008
    %v1013 = vand.u32 2147483647, %v961
    %vm1014 = vcmp.eq.f32.partialorder %v1013, 8.507059e+37
    %v1015 = vand.u32 %v961, 2147483648
    %v1016 = vor.u32 1.1754944e-38, %v1015
    %v1017 = vsel %vm1014, %v1016, %v1012
    %v1018 = vmul.f32 %v943, %v975
    %v1019 = vmul.f32 %v945, %v989
    %v1020 = vmul.f32 %v947, %v1003
    %v1021 = vmul.f32 %v949, %v1017
    %1022 = vrot.lane.b32.xlu0 %v164, 48
    %v1023 = vpop.permute.xlu0 %1022
    %v1026 = vsel %vm178, %v1018, 0
    %1028 = vmatpush.msra.mxu0 0.0
    %1029 = vmatpush.msra.mxu0 0.0
    %1030 = vmatpush.msra.mxu0 0.0
    %1031 = vmatpush.msra.mxu0 0.0
    %1032 = vmatpush.msra.mxu0 0.0
    %1033 = vmatpush.msra.mxu0 0.0
    %1034 = vmatpush.msra.mxu0 0.0
    %1035 = vmatpush.msra.mxu0 0.0
    %1036 = vmatpush.msra.mxu0 0.0
    %1037 = vmatpush.msra.mxu0 0.0
    %1038 = vmatpush.msra.mxu0 0.0
    %1039 = vmatpush.msra.mxu0 0.0
    %1040 = vmatpush.msra.mxu0 0.0
    %1041 = vmatpush.msra.mxu0 0.0
    %1042 = vmatpush.msra.mxu0 0.0
    %1043 = vmatpush.msra.mxu0 %v1023
    %1044 = vmatmul.f32.gmra.mxu0 %v1026
    %v1045 = vpop.f32.mrf.mxu0
    %v1046 = vadd.f32 0.0, %v1045
    %1047 = vdwg.mxu0
    %1048 = vrot.lane.b32.xlu0 %v167, 48
    %v1049 = vpop.permute.xlu0 %1048
    %v1052 = vsel %vm178, %v1019, 0
    %1054 = vmatpush.msra.mxu0 0.0
    %1055 = vmatpush.msra.mxu0 0.0
    %1056 = vmatpush.msra.mxu0 0.0
    %1057 = vmatpush.msra.mxu0 0.0
    %1058 = vmatpush.msra.mxu0 0.0
    %1059 = vmatpush.msra.mxu0 0.0
    %1060 = vmatpush.msra.mxu0 0.0
    %1061 = vmatpush.msra.mxu0 0.0
    %1062 = vmatpush.msra.mxu0 0.0
    %1063 = vmatpush.msra.mxu0 0.0
    %1064 = vmatpush.msra.mxu0 0.0
    %1065 = vmatpush.msra.mxu0 0.0
    %1066 = vmatpush.msra.mxu0 0.0
    %1067 = vmatpush.msra.mxu0 0.0
    %1068 = vmatpush.msra.mxu0 0.0
    %1069 = vmatpush.msra.mxu0 %v1049
    %1070 = vmatmul.f32.gmra.mxu0 %v1052
    %v1071 = vpop.f32.mrf.mxu0
    %v1072 = vadd.f32 0.0, %v1071
    %1073 = vdwg.mxu0
    %1074 = vrot.lane.b32.xlu0 %v170, 48
    %v1075 = vpop.permute.xlu0 %1074
    %v1078 = vsel %vm178, %v1020, 0
    %1080 = vmatpush.msra.mxu0 0.0
    %1081 = vmatpush.msra.mxu0 0.0
    %1082 = vmatpush.msra.mxu0 0.0
    %1083 = vmatpush.msra.mxu0 0.0
    %1084 = vmatpush.msra.mxu0 0.0
    %1085 = vmatpush.msra.mxu0 0.0
    %1086 = vmatpush.msra.mxu0 0.0
    %1087 = vmatpush.msra.mxu0 0.0
    %1088 = vmatpush.msra.mxu0 0.0
    %1089 = vmatpush.msra.mxu0 0.0
    %1090 = vmatpush.msra.mxu0 0.0
    %1091 = vmatpush.msra.mxu0 0.0
    %1092 = vmatpush.msra.mxu0 0.0
    %1093 = vmatpush.msra.mxu0 0.0
    %1094 = vmatpush.msra.mxu0 0.0
    %1095 = vmatpush.msra.mxu0 %v1075
    %1096 = vmatmul.f32.gmra.mxu0 %v1078
    %v1097 = vpop.f32.mrf.mxu0
    %v1098 = vadd.f32 0.0, %v1097
    %1099 = vdwg.mxu0
    %1100 = vrot.lane.b32.xlu0 %v173, 48
    %v1101 = vpop.permute.xlu0 %1100
    %v1104 = vsel %vm178, %v1021, 0
    %1106 = vmatpush.msra.mxu0 0.0
    %1107 = vmatpush.msra.mxu0 0.0
    %1108 = vmatpush.msra.mxu0 0.0
    %1109 = vmatpush.msra.mxu0 0.0
    %1110 = vmatpush.msra.mxu0 0.0
    %1111 = vmatpush.msra.mxu0 0.0
    %1112 = vmatpush.msra.mxu0 0.0
    %1113 = vmatpush.msra.mxu0 0.0
    %1114 = vmatpush.msra.mxu0 0.0
    %1115 = vmatpush.msra.mxu0 0.0
    %1116 = vmatpush.msra.mxu0 0.0
    %1117 = vmatpush.msra.mxu0 0.0
    %1118 = vmatpush.msra.mxu0 0.0
    %1119 = vmatpush.msra.mxu0 0.0
    %1120 = vmatpush.msra.mxu0 0.0
    %1121 = vmatpush.msra.mxu0 %v1101
    %1122 = vmatmul.f32.gmra.mxu0 %v1104
    %v1123 = vpop.f32.mrf.mxu0
    %v1124 = vadd.f32 0.0, %v1123
    %1125 = vdwg.mxu0
    %1126 = vrot.lane.b32.xlu0 %v152, 104
    %v1127 = vpop.permute.xlu0 %1126
    %1128 = vrot.lane.b32.xlu0 %v164, 72
    %v1129 = vpop.permute.xlu0 %1128
    %v1130 = vsel %vm178, %v1127, 0
    %v1132 = vsel %vm178, %v1129, 0
    %1134 = vmatpush.xpose.msra.mxu0 0.0
    %1135 = vmatpush.xpose.msra.mxu0 0.0
    %1136 = vmatpush.xpose.msra.mxu0 0.0
    %1137 = vmatpush.xpose.msra.mxu0 0.0
    %1138 = vmatpush.xpose.msra.mxu0 0.0
    %1139 = vmatpush.xpose.msra.mxu0 0.0
    %1140 = vmatpush.xpose.msra.mxu0 0.0
    %1141 = vmatpush.xpose.msra.mxu0 0.0
    %1142 = vmatpush.xpose.msra.mxu0 0.0
    %1143 = vmatpush.xpose.msra.mxu0 0.0
    %1144 = vmatpush.xpose.msra.mxu0 0.0
    %1145 = vmatpush.xpose.msra.mxu0 0.0
    %1146 = vmatpush.xpose.msra.mxu0 0.0
    %1147 = vmatpush.xpose.msra.mxu0 0.0
    %1148 = vmatpush.xpose.msra.mxu0 0.0
    %1149 = vmatpush.xpose.msra.mxu0 %v1132
    %1150 = vmatmul.f32.gmra.mxu0 %v1130
    %v1151 = vpop.f32.mrf.mxu0
    %v1152 = vadd.f32 0.0, %v1151
    %1153 = vdwg.mxu0
    %1154 = vrot.lane.b32.xlu0 %v155, 104
    %v1155 = vpop.permute.xlu0 %1154
    %1156 = vrot.lane.b32.xlu0 %v167, 72
    %v1157 = vpop.permute.xlu0 %1156
    %v1158 = vsel %vm178, %v1155, 0
    %v1160 = vsel %vm178, %v1157, 0
    %1162 = vmatpush.xpose.msra.mxu0 0.0
    %1163 = vmatpush.xpose.msra.mxu0 0.0
    %1164 = vmatpush.xpose.msra.mxu0 0.0
    %1165 = vmatpush.xpose.msra.mxu0 0.0
    %1166 = vmatpush.xpose.msra.mxu0 0.0
    %1167 = vmatpush.xpose.msra.mxu0 0.0
    %1168 = vmatpush.xpose.msra.mxu0 0.0
    %1169 = vmatpush.xpose.msra.mxu0 0.0
    %1170 = vmatpush.xpose.msra.mxu0 0.0
    %1171 = vmatpush.xpose.msra.mxu0 0.0
    %1172 = vmatpush.xpose.msra.mxu0 0.0
    %1173 = vmatpush.xpose.msra.mxu0 0.0
    %1174 = vmatpush.xpose.msra.mxu0 0.0
    %1175 = vmatpush.xpose.msra.mxu0 0.0
    %1176 = vmatpush.xpose.msra.mxu0 0.0
    %1177 = vmatpush.xpose.msra.mxu0 %v1160
    %1178 = vmatmul.f32.gmra.mxu0 %v1158
    %v1179 = vpop.f32.mrf.mxu0
    %v1180 = vadd.f32 0.0, %v1179
    %1181 = vdwg.mxu0
    %1182 = vrot.lane.b32.xlu0 %v158, 104
    %v1183 = vpop.permute.xlu0 %1182
    %1184 = vrot.lane.b32.xlu0 %v170, 72
    %v1185 = vpop.permute.xlu0 %1184
    %v1186 = vsel %vm178, %v1183, 0
    %v1188 = vsel %vm178, %v1185, 0
    %1190 = vmatpush.xpose.msra.mxu0 0.0
    %1191 = vmatpush.xpose.msra.mxu0 0.0
    %1192 = vmatpush.xpose.msra.mxu0 0.0
    %1193 = vmatpush.xpose.msra.mxu0 0.0
    %1194 = vmatpush.xpose.msra.mxu0 0.0
    %1195 = vmatpush.xpose.msra.mxu0 0.0
    %1196 = vmatpush.xpose.msra.mxu0 0.0
    %1197 = vmatpush.xpose.msra.mxu0 0.0
    %1198 = vmatpush.xpose.msra.mxu0 0.0
    %1199 = vmatpush.xpose.msra.mxu0 0.0
    %1200 = vmatpush.xpose.msra.mxu0 0.0
    %1201 = vmatpush.xpose.msra.mxu0 0.0
    %1202 = vmatpush.xpose.msra.mxu0 0.0
    %1203 = vmatpush.xpose.msra.mxu0 0.0
    %1204 = vmatpush.xpose.msra.mxu0 0.0
    %1205 = vmatpush.xpose.msra.mxu0 %v1188
    %1206 = vmatmul.f32.gmra.mxu0 %v1186
    %v1207 = vpop.f32.mrf.mxu0
    %v1208 = vadd.f32 0.0, %v1207
    %1209 = vdwg.mxu0
    %1210 = vrot.lane.b32.xlu0 %v161, 104
    %v1211 = vpop.permute.xlu0 %1210
    %1212 = vrot.lane.b32.xlu0 %v173, 72
    %v1213 = vpop.permute.xlu0 %1212
    %v1214 = vsel %vm178, %v1211, 0
    %v1216 = vsel %vm178, %v1213, 0
    %1218 = vmatpush.xpose.msra.mxu0 0.0
    %1219 = vmatpush.xpose.msra.mxu0 0.0
    %1220 = vmatpush.xpose.msra.mxu0 0.0
    %1221 = vmatpush.xpose.msra.mxu0 0.0
    %1222 = vmatpush.xpose.msra.mxu0 0.0
    %1223 = vmatpush.xpose.msra.mxu0 0.0
    %1224 = vmatpush.xpose.msra.mxu0 0.0
    %1225 = vmatpush.xpose.msra.mxu0 0.0
    %1226 = vmatpush.xpose.msra.mxu0 0.0
    %1227 = vmatpush.xpose.msra.mxu0 0.0
    %1228 = vmatpush.xpose.msra.mxu0 0.0
    %1229 = vmatpush.xpose.msra.mxu0 0.0
    %1230 = vmatpush.xpose.msra.mxu0 0.0
    %1231 = vmatpush.xpose.msra.mxu0 0.0
    %1232 = vmatpush.xpose.msra.mxu0 0.0
    %1233 = vmatpush.xpose.msra.mxu0 %v1216
    %1234 = vmatmul.f32.gmra.mxu0 %v1214
    %v1235 = vpop.f32.mrf.mxu0
    %v1236 = vadd.f32 0.0, %v1235
    %1237 = vdwg.mxu0
    %s1238 = scalar_lea.vmem [#allocation11], 24
    %1239 = vst.msk [vmem:[%s1238] sm:$0xff] %vm178, %v1152
    %1240 = vst.msk [vmem:[%s1238 + $0x20] sm:$0xff] %vm178, %v1180
    %1241 = vst.msk [vmem:[%s1238 + $0x40] sm:$0xff] %vm178, %v1208
    %1242 = vst.msk [vmem:[%s1238 + $0x60] sm:$0xff] %vm178, %v1236
    %v1243 = vsel %vm178, %v1152, -inf
    %1244 = vmax.xlane.f32.xlu0 %v1243
    %v1245 = vpop.xlane.xlu0 %1244
    %v1246 = vsel %vm178, %v1180, -inf
    %1247 = vmax.xlane.f32.xlu0 %v1246
    %v1248 = vpop.xlane.xlu0 %1247
    %v1249 = vsel %vm178, %v1208, -inf
    %1250 = vmax.xlane.f32.xlu0 %v1249
    %v1251 = vpop.xlane.xlu0 %1250
    %v1252 = vsel %vm178, %v1236, -inf
    %1253 = vmax.xlane.f32.xlu0 %v1252
    %v1254 = vpop.xlane.xlu0 %1253
    %v1255 = vsub.f32 %v1152, %v1245
    %v1256 = vsub.f32 %v1180, %v1248
    %v1257 = vsub.f32 %v1208, %v1251
    %v1258 = vsub.f32 %v1236, %v1254
    %v1259 = vmul.f32 %v1255, 1.442695
    %v1260 = vpow.pop %v1259
    %v1261 = vmul.f32 %v1256, 1.442695
    %v1262 = vpow.pop %v1261
    %v1263 = vmul.f32 %v1257, 1.442695
    %v1264 = vpow.pop %v1263
    %v1265 = vmul.f32 %v1258, 1.442695
    %v1266 = vpow.pop %v1265
    %v1267 = vsel %vm178, %v1260, 0.0
    %1268 = vadd.xlane.f32.xlu0 %v1267
    %v1269 = vpop.xlane.xlu0 %1268
    %v1270 = vsel %vm178, %v1262, 0.0
    %1271 = vadd.xlane.f32.xlu0 %v1270
    %v1272 = vpop.xlane.xlu0 %1271
    %v1273 = vsel %vm178, %v1264, 0.0
    %1274 = vadd.xlane.f32.xlu0 %v1273
    %v1275 = vpop.xlane.xlu0 %1274
    %v1276 = vsel %vm178, %v1266, 0.0
    %1277 = vadd.xlane.f32.xlu0 %v1276
    %v1278 = vpop.xlane.xlu0 %1277
    %v1279 = vrcp.pop %v1269
    %v1280 = vmul.f32 %v1269, %v1279
    %v1281 = vsub.f32 1.0, %v1280
    %v1282 = vmul.f32 %v1279, %v1281
    %v1283 = vadd.f32 %v1279, %v1282
    %vm1284 = vweird.f32 %v1269
    %vm1285 = vweird.f32 %v1279
    %vm1286 = vmor %vm1284, %vm1285
    %v1287 = vsel %vm1286, %v1279, %v1283
    %v1288 = vand.u32 2147483647, %v1269
    %vm1289 = vcmp.eq.f32.partialorder %v1288, 8.507059e+37
    %v1290 = vand.u32 %v1269, 2147483648
    %v1291 = vor.u32 1.1754944e-38, %v1290
    %v1292 = vsel %vm1289, %v1291, %v1287
    %v1293 = vrcp.pop %v1272
    %v1294 = vmul.f32 %v1272, %v1293
    %v1295 = vsub.f32 1.0, %v1294
    %v1296 = vmul.f32 %v1293, %v1295
    %v1297 = vadd.f32 %v1293, %v1296
    %vm1298 = vweird.f32 %v1272
    %vm1299 = vweird.f32 %v1293
    %vm1300 = vmor %vm1298, %vm1299
    %v1301 = vsel %vm1300, %v1293, %v1297
    %v1302 = vand.u32 2147483647, %v1272
    %vm1303 = vcmp.eq.f32.partialorder %v1302, 8.507059e+37
    %v1304 = vand.u32 %v1272, 2147483648
    %v1305 = vor.u32 1.1754944e-38, %v1304
    %v1306 = vsel %vm1303, %v1305, %v1301
    %v1307 = vrcp.pop %v1275
    %v1308 = vmul.f32 %v1275, %v1307
    %v1309 = vsub.f32 1.0, %v1308
    %v1310 = vmul.f32 %v1307, %v1309
    %v1311 = vadd.f32 %v1307, %v1310
    %vm1312 = vweird.f32 %v1275
    %vm1313 = vweird.f32 %v1307
    %vm1314 = vmor %vm1312, %vm1313
    %v1315 = vsel %vm1314, %v1307, %v1311
    %v1316 = vand.u32 2147483647, %v1275
    %vm1317 = vcmp.eq.f32.partialorder %v1316, 8.507059e+37
    %v1318 = vand.u32 %v1275, 2147483648
    %v1319 = vor.u32 1.1754944e-38, %v1318
    %v1320 = vsel %vm1317, %v1319, %v1315
    %v1321 = vrcp.pop %v1278
    %v1322 = vmul.f32 %v1278, %v1321
    %v1323 = vsub.f32 1.0, %v1322
    %v1324 = vmul.f32 %v1321, %v1323
    %v1325 = vadd.f32 %v1321, %v1324
    %vm1326 = vweird.f32 %v1278
    %vm1327 = vweird.f32 %v1321
    %vm1328 = vmor %vm1326, %vm1327
    %v1329 = vsel %vm1328, %v1321, %v1325
    %v1330 = vand.u32 2147483647, %v1278
    %vm1331 = vcmp.eq.f32.partialorder %v1330, 8.507059e+37
    %v1332 = vand.u32 %v1278, 2147483648
    %v1333 = vor.u32 1.1754944e-38, %v1332
    %v1334 = vsel %vm1331, %v1333, %v1329
    %v1335 = vmul.f32 %v1260, %v1292
    %v1336 = vmul.f32 %v1262, %v1306
    %v1337 = vmul.f32 %v1264, %v1320
    %v1338 = vmul.f32 %v1266, %v1334
    %1339 = vrot.lane.b32.xlu0 %v164, 40
    %v1340 = vpop.permute.xlu0 %1339
    %v1343 = vsel %vm178, %v1335, 0
    %1345 = vmatpush.msra.mxu0 0.0
    %1346 = vmatpush.msra.mxu0 0.0
    %1347 = vmatpush.msra.mxu0 0.0
    %1348 = vmatpush.msra.mxu0 0.0
    %1349 = vmatpush.msra.mxu0 0.0
    %1350 = vmatpush.msra.mxu0 0.0
    %1351 = vmatpush.msra.mxu0 0.0
    %1352 = vmatpush.msra.mxu0 0.0
    %1353 = vmatpush.msra.mxu0 0.0
    %1354 = vmatpush.msra.mxu0 0.0
    %1355 = vmatpush.msra.mxu0 0.0
    %1356 = vmatpush.msra.mxu0 0.0
    %1357 = vmatpush.msra.mxu0 0.0
    %1358 = vmatpush.msra.mxu0 0.0
    %1359 = vmatpush.msra.mxu0 0.0
    %1360 = vmatpush.msra.mxu0 %v1340
    %1361 = vmatmul.f32.gmra.mxu0 %v1343
    %v1362 = vpop.f32.mrf.mxu0
    %v1363 = vadd.f32 0.0, %v1362
    %1364 = vdwg.mxu0
    %1365 = vrot.lane.b32.xlu0 %v167, 40
    %v1366 = vpop.permute.xlu0 %1365
    %v1369 = vsel %vm178, %v1336, 0
    %1371 = vmatpush.msra.mxu0 0.0
    %1372 = vmatpush.msra.mxu0 0.0
    %1373 = vmatpush.msra.mxu0 0.0
    %1374 = vmatpush.msra.mxu0 0.0
    %1375 = vmatpush.msra.mxu0 0.0
    %1376 = vmatpush.msra.mxu0 0.0
    %1377 = vmatpush.msra.mxu0 0.0
    %1378 = vmatpush.msra.mxu0 0.0
    %1379 = vmatpush.msra.mxu0 0.0
    %1380 = vmatpush.msra.mxu0 0.0
    %1381 = vmatpush.msra.mxu0 0.0
    %1382 = vmatpush.msra.mxu0 0.0
    %1383 = vmatpush.msra.mxu0 0.0
    %1384 = vmatpush.msra.mxu0 0.0
    %1385 = vmatpush.msra.mxu0 0.0
    %1386 = vmatpush.msra.mxu0 %v1366
    %1387 = vmatmul.f32.gmra.mxu0 %v1369
    %v1388 = vpop.f32.mrf.mxu0
    %v1389 = vadd.f32 0.0, %v1388
    %1390 = vdwg.mxu0
    %1391 = vrot.lane.b32.xlu0 %v170, 40
    %v1392 = vpop.permute.xlu0 %1391
    %v1395 = vsel %vm178, %v1337, 0
    %1397 = vmatpush.msra.mxu0 0.0
    %1398 = vmatpush.msra.mxu0 0.0
    %1399 = vmatpush.msra.mxu0 0.0
    %1400 = vmatpush.msra.mxu0 0.0
    %1401 = vmatpush.msra.mxu0 0.0
    %1402 = vmatpush.msra.mxu0 0.0
    %1403 = vmatpush.msra.mxu0 0.0
    %1404 = vmatpush.msra.mxu0 0.0
    %1405 = vmatpush.msra.mxu0 0.0
    %1406 = vmatpush.msra.mxu0 0.0
    %1407 = vmatpush.msra.mxu0 0.0
    %1408 = vmatpush.msra.mxu0 0.0
    %1409 = vmatpush.msra.mxu0 0.0
    %1410 = vmatpush.msra.mxu0 0.0
    %1411 = vmatpush.msra.mxu0 0.0
    %1412 = vmatpush.msra.mxu0 %v1392
    %1413 = vmatmul.f32.gmra.mxu0 %v1395
    %v1414 = vpop.f32.mrf.mxu0
    %v1415 = vadd.f32 0.0, %v1414
    %1416 = vdwg.mxu0
    %1417 = vrot.lane.b32.xlu0 %v173, 40
    %v1418 = vpop.permute.xlu0 %1417
    %v1421 = vsel %vm178, %v1338, 0
    %1423 = vmatpush.msra.mxu0 0.0
    %1424 = vmatpush.msra.mxu0 0.0
    %1425 = vmatpush.msra.mxu0 0.0
    %1426 = vmatpush.msra.mxu0 0.0
    %1427 = vmatpush.msra.mxu0 0.0
    %1428 = vmatpush.msra.mxu0 0.0
    %1429 = vmatpush.msra.mxu0 0.0
    %1430 = vmatpush.msra.mxu0 0.0
    %1431 = vmatpush.msra.mxu0 0.0
    %1432 = vmatpush.msra.mxu0 0.0
    %1433 = vmatpush.msra.mxu0 0.0
    %1434 = vmatpush.msra.mxu0 0.0
    %1435 = vmatpush.msra.mxu0 0.0
    %1436 = vmatpush.msra.mxu0 0.0
    %1437 = vmatpush.msra.mxu0 0.0
    %1438 = vmatpush.msra.mxu0 %v1418
    %1439 = vmatmul.f32.gmra.mxu0 %v1421
    %v1440 = vpop.f32.mrf.mxu0
    %v1441 = vadd.f32 0.0, %v1440
    %1442 = vdwg.mxu0
    %1447 = vrot.lane.b32.xlu0 %v729, 8
    %v1448 = vpop.permute.xlu0 %1447
    %1449 = vrot.lane.b32.xlu0 %v755, 8
    %v1450 = vpop.permute.xlu0 %1449
    %1451 = vrot.lane.b32.xlu0 %v781, 8
    %v1452 = vpop.permute.xlu0 %1451
    %1453 = vrot.lane.b32.xlu0 %v807, 8
    %v1454 = vpop.permute.xlu0 %1453
    %1463 = vrot.lane.b32.xlu0 %v1046, 16
    %v1464 = vpop.permute.xlu0 %1463
    %1465 = vrot.lane.b32.xlu0 %v1072, 16
    %v1466 = vpop.permute.xlu0 %1465
    %1467 = vrot.lane.b32.xlu0 %v1098, 16
    %v1468 = vpop.permute.xlu0 %1467
    %1469 = vrot.lane.b32.xlu0 %v1124, 16
    %v1470 = vpop.permute.xlu0 %1469
    %1479 = vrot.lane.b32.xlu0 %v1363, 24
    %v1480 = vpop.permute.xlu0 %1479
    %1481 = vrot.lane.b32.xlu0 %v1389, 24
    %v1482 = vpop.permute.xlu0 %1481
    %1483 = vrot.lane.b32.xlu0 %v1415, 24
    %v1484 = vpop.permute.xlu0 %1483
    %1485 = vrot.lane.b32.xlu0 %v1441, 24
    %v1486 = vpop.permute.xlu0 %1485
    %v1491 = vsel %vm178, %v412, %v1448
    %v1492 = vsel %vm178, %v438, %v1450
    %v1493 = vsel %vm178, %v464, %v1452
    %v1494 = vsel %vm178, %v490, %v1454
    %vm1495 = vcmask 130048
    %v1496 = vsel %vm1495, %v1491, %v1464
    %v1497 = vsel %vm1495, %v1492, %v1466
    %v1498 = vsel %vm1495, %v1493, %v1468
    %v1499 = vsel %vm1495, %v1494, %v1470
    %vm1500 = vcmask 195584
    %v1501 = vsel %vm1500, %v1496, %v1480
    %v1502 = vsel %vm1500, %v1497, %v1482
    %v1503 = vsel %vm1500, %v1498, %v1484
    %v1504 = vsel %vm1500, %v1499, %v1486
    %v1505 = vld [vmem:[#allocation8] sm:$0xff]
    %v1506 = vld [vmem:[#allocation8 + $0x8] sm:$0xff]
    %v1507 = vld [vmem:[#allocation8 + $0x10] sm:$0xff]
    %v1508 = vld [vmem:[#allocation8 + $0x18] sm:$0xff]
    %v1509 = vld [vmem:[%s5] sm:$0x1]
    %v1511 = vperm.slane %v1509, 0
    %v1514 = vsel %vm109, %v1501, 0
    %v1517 = vsel %vm109, %v1502, 0
    %v1520 = vsel %vm109, %v1503, 0
    %v1523 = vsel %vm109, %v1504, 0
    %1525 = vmatpush.msra.mxu0 0.0
    %1526 = vmatpush.msra.mxu0 0.0
    %1527 = vmatpush.msra.mxu0 0.0
    %1528 = vmatpush.msra.mxu0 0.0
    %1529 = vmatpush.msra.mxu0 0.0
    %1530 = vmatpush.msra.mxu0 0.0
    %1531 = vmatpush.msra.mxu0 0.0
    %1532 = vmatpush.msra.mxu0 0.0
    %1533 = vmatpush.msra.mxu0 0.0
    %1534 = vmatpush.msra.mxu0 0.0
    %1535 = vmatpush.msra.mxu0 0.0
    %1536 = vmatpush.msra.mxu0 0.0
    %1537 = vmatpush.msra.mxu0 %v1508
    %1538 = vmatpush.msra.mxu0 %v1507
    %1539 = vmatpush.msra.mxu0 %v1506
    %1540 = vmatpush.msra.mxu0 %v1505
    %1541 = vmatmul.f32.gmra.mxu0 %v1514
    %v1542 = vpop.f32.mrf.mxu0
    %v1543 = vadd.f32 %v1511, %v1542
    %1544 = vmatmul.f32.gmra.mxu0 %v1517
    %v1545 = vpop.f32.mrf.mxu0
    %v1546 = vadd.f32 %v1511, %v1545
    %1547 = vmatmul.f32.gmra.mxu0 %v1520
    %v1548 = vpop.f32.mrf.mxu0
    %v1549 = vadd.f32 %v1511, %v1548
    %1550 = vmatmul.f32.gmra.mxu0 %v1523
    %v1551 = vpop.f32.mrf.mxu0
    %v1552 = vadd.f32 %v1511, %v1551
    %1553 = vdwg.mxu0
    %v1554 = vld [vmem:[%s6] sm:$0x3]
    %v1555 = vadd.f32 %v1543, %v93
    %v1556 = vadd.f32 %v1546, %v94
    %v1557 = vadd.f32 %v1549, %v95
    %v1558 = vadd.f32 %v1552, %v96
    %v1559 = vsel %vm109, %v1555, 0.0
    %1560 = vadd.xlane.f32.xlu0 %v1559
    %v1561 = vpop.xlane.xlu0 %1560
    %v1562 = vsel %vm109, %v1556, 0.0
    %1563 = vadd.xlane.f32.xlu0 %v1562
    %v1564 = vpop.xlane.xlu0 %1563
    %v1565 = vsel %vm109, %v1557, 0.0
    %1566 = vadd.xlane.f32.xlu0 %v1565
    %v1567 = vpop.xlane.xlu0 %1566
    %v1568 = vsel %vm109, %v1558, 0.0
    %1569 = vadd.xlane.f32.xlu0 %v1568
    %v1570 = vpop.xlane.xlu0 %1569
    %v1571 = vrcp.pop 32.0
    %v1572 = vmul.f32 32.0, %v1571
    %v1573 = vsub.f32 1.0, %v1572
    %v1574 = vmul.f32 %v1571, %v1573
    %v1575 = vadd.f32 %v1571, %v1574
    %vm1576 = vweird.f32 %v1571
    %v1577 = vsel %vm1576, %v1571, %v1575
    %v1578 = vmul.f32 %v1561, %v1577
    %v1579 = vmul.f32 %v1564, %v1577
    %v1580 = vmul.f32 %v1567, %v1577
    %v1581 = vmul.f32 %v1570, %v1577
    %v1582 = vsub.f32 %v1555, %v1578
    %v1583 = vsub.f32 %v1556, %v1579
    %v1584 = vsub.f32 %v1557, %v1580
    %v1585 = vsub.f32 %v1558, %v1581
    %v1586 = vmul.f32 %v1582, %v1582
    %v1587 = vmul.f32 %v1583, %v1583
    %v1588 = vmul.f32 %v1584, %v1584
    %v1589 = vmul.f32 %v1585, %v1585
    %v1590 = vsel %vm109, %v1586, 0.0
    %1591 = vadd.xlane.f32.xlu0 %v1590
    %v1592 = vpop.xlane.xlu0 %1591
    %v1593 = vsel %vm109, %v1587, 0.0
    %1594 = vadd.xlane.f32.xlu0 %v1593
    %v1595 = vpop.xlane.xlu0 %1594
    %v1596 = vsel %vm109, %v1588, 0.0
    %1597 = vadd.xlane.f32.xlu0 %v1596
    %v1598 = vpop.xlane.xlu0 %1597
    %v1599 = vsel %vm109, %v1589, 0.0
    %1600 = vadd.xlane.f32.xlu0 %v1599
    %v1601 = vpop.xlane.xlu0 %1600
    %v1602 = vmul.f32 %v1592, %v1577
    %v1603 = vmul.f32 %v1595, %v1577
    %v1604 = vmul.f32 %v1598, %v1577
    %v1605 = vmul.f32 %v1601, %v1577
    %v1606 = vadd.f32 %v1602, 1e-05
    %v1607 = vadd.f32 %v1603, 1e-05
    %v1608 = vadd.f32 %v1604, 1e-05
    %v1609 = vadd.f32 %v1605, 1e-05
    %v1610 = vrsqrt.pop %v1606
    %v1611 = vmul.f32 %v1610, %v1606
    %v1612 = vmul.f32 %v1611, %v1610
    %v1613 = vmul.f32 0.5, %v1612
    %v1614 = vsub.f32 1.5, %v1613
    %v1615 = vmul.f32 %v1610, %v1614
    %vm1616 = vweird.f32 %v1606
    %vm1617 = vweird.f32 %v1610
    %vm1618 = vmor %vm1616, %vm1617
    %v1619 = vsel %vm1618, %v1610, %v1615
    %v1620 = vrsqrt.pop %v1607
    %v1621 = vmul.f32 %v1620, %v1607
    %v1622 = vmul.f32 %v1621, %v1620
    %v1623 = vmul.f32 0.5, %v1622
    %v1624 = vsub.f32 1.5, %v1623
    %v1625 = vmul.f32 %v1620, %v1624
    %vm1626 = vweird.f32 %v1607
    %vm1627 = vweird.f32 %v1620
    %vm1628 = vmor %vm1626, %vm1627
    %v1629 = vsel %vm1628, %v1620, %v1625
    %v1630 = vrsqrt.pop %v1608
    %v1631 = vmul.f32 %v1630, %v1608
    %v1632 = vmul.f32 %v1631, %v1630
    %v1633 = vmul.f32 0.5, %v1632
    %v1634 = vsub.f32 1.5, %v1633
    %v1635 = vmul.f32 %v1630, %v1634
    %vm1636 = vweird.f32 %v1608
    %vm1637 = vweird.f32 %v1630
    %vm1638 = vmor %vm1636, %vm1637
    %v1639 = vsel %vm1638, %v1630, %v1635
    %v1640 = vrsqrt.pop %v1609
    %v1641 = vmul.f32 %v1640, %v1609
    %v1642 = vmul.f32 %v1641, %v1640
    %v1643 = vmul.f32 0.5, %v1642
    %v1644 = vsub.f32 1.5, %v1643
    %v1645 = vmul.f32 %v1640, %v1644
    %vm1646 = vweird.f32 %v1609
    %vm1647 = vweird.f32 %v1640
    %vm1648 = vmor %vm1646, %vm1647
    %v1649 = vsel %vm1648, %v1640, %v1645
    %v1650 = vmul.f32 %v1582, %v1619
    %v1651 = vmul.f32 %v1583, %v1629
    %v1652 = vmul.f32 %v1584, %v1639
    %v1653 = vmul.f32 %v1585, %v1649
    %v1654 = vperm.slane %v1554, 0
    %v1655 = vmul.f32 %v1650, %v1654
    %v1656 = vmul.f32 %v1651, %v1654
    %v1657 = vmul.f32 %v1652, %v1654
    %v1658 = vmul.f32 %v1653, %v1654
    %v1659 = vperm.slane %v1554, 1
    %v1660 = vadd.f32 %v1655, %v1659
    %v1661 = vadd.f32 %v1656, %v1659
    %v1662 = vadd.f32 %v1657, %v1659
    %v1663 = vadd.f32 %v1658, %v1659
    %1664 = vst.msk [vmem:[#allocation10] sm:$0xff] %vm109, %v1660
    %1665 = vst.msk [vmem:[#allocation10 + $0x8] sm:$0xff] %vm109, %v1661
    %1666 = vst.msk [vmem:[#allocation10 + $0x10] sm:$0xff] %vm109, %v1662
    %1667 = vst.msk [vmem:[#allocation10 + $0x18] sm:$0xff] %vm109, %v1663
    // Predicated region
    $region46: #{tpu_custom_call.1} parent=1 // pred_check
      _
    $region47: #{tpu_custom_call.1} parent=1 // pred_check_branch
      %1669 = sbr.rel (0) target = $region49
    $region48: #{tpu_custom_call.1} parent=1 // pred_region
      %1671 = vsyncadd [#allocation4], 0
      %s1672 = sshll.u32 [#allocation10], 4
      %s1673 = int_to_ptr.vmem [resolvable:$true] %s1672
      %s1674 = sshll.u32 %s7, 4
      %s1675 = int_to_ptr.hbm [resolvable:$true] %s1674
      %1680 = dma.vmem_to_hbm [thread:$0]  %s1673, 512, %s1675, [#allocation4], 128, 128, 8
    $region49: #{tpu_custom_call.1} parent=1 // pred_fallthru
      _
    // Predicated region
    $region50: #{tpu_custom_call.1} parent=1 // pred_check
      _
    $region51: #{tpu_custom_call.1} parent=1 // pred_check_branch
      %1682 = sbr.rel (0) target = $region53
    $region52: #{tpu_custom_call.1} parent=1 // pred_region
      %1684 = vsyncadd [#allocation12], 0
      %s1685 = sshll.u32 [#allocation11], 4
      %s1686 = int_to_ptr.vmem [resolvable:$true] %s1685
      %s1687 = sshll.u32 %s8, 4
      %s1688 = int_to_ptr.hbm [resolvable:$true] %s1687
      %1693 = dma.vmem_to_hbm [thread:$0]  %s1686, 2048, %s1688, [#allocation12], 128, 128, 8
    $region53: #{tpu_custom_call.1} parent=1 // pred_fallthru
      _
    // Predicated region
    $region54: #{tpu_custom_call.1} parent=1 // pred_check
      _
    $region55: #{tpu_custom_call.1} parent=1 // pred_check_branch
      %1695 = sbr.rel (0) target = $region57
    $region56: #{tpu_custom_call.1} parent=1 // pred_region
      %1697 = dma.done [#allocation4], 512
    $region57: #{tpu_custom_call.1} parent=1 // pred_fallthru
      _
    // Predicated region
    $region58: #{tpu_custom_call.1} parent=1 // pred_check
      _
    $region59: #{tpu_custom_call.1} parent=1 // pred_check_branch
      %1699 = sbr.rel (0) target = $region61
    $region60: #{tpu_custom_call.1} parent=1 // pred_region
      %1701 = dma.done [#allocation12], 2048
    $region61: #{tpu_custom_call.1} parent=1 // pred_fallthru
      _
    %1702 = vsyncpa [#allocation3], 1
    %1703 = vsyncpa [#allocation6], 1
    %1704 = vsyncpa [#allocation9], 1
    %1705 = vsyncpa [#allocation4], 1
    %1706 = vsyncpa [#allocation12], 1

</llo_original>
